<compile_context>
chip_gen: v7x
topology: tpu7x:2x2x1
jax: 0.10.0
libtpu: 0.0.40
codegen_flags: <defaults>
</compile_context>

<pallas_src>
import jax
import jax.numpy as jnp
from jax import lax
from jax.experimental import pallas as pl
from jax.experimental.pallas import tpu as pltpu


# ----------------------------------------------------------------------------
# In-kernel building blocks
# ----------------------------------------------------------------------------
def _mlp_log_softmax(x, w1_ref, b1_ref, w2_ref, b2_ref):
    """Linear -> ReLU -> (dropout=identity) -> Linear -> log_softmax(dim=1).

    w2/b2 are class-padded to a 128-lane multiple with zero weights and -1e30
    bias, so the full-width log_softmax equals the true-class log_softmax on
    the real class lanes while the store stays lane-dense (no vst.msk).
    """
    h = jnp.dot(x, w1_ref[...], preferred_element_type=jnp.float32) + b1_ref[...]
    h = jnp.maximum(h, 0.0)                                   # F.relu
    logits = jnp.dot(h, w2_ref[...], preferred_element_type=jnp.float32) + b2_ref[...]
    m = jnp.max(logits, axis=-1, keepdims=True)
    z = logits - m
    lse = jnp.log(jnp.sum(jnp.exp(z), axis=-1, keepdims=True))
    return z - lse                                            # F.log_softmax


# ----------------------------------------------------------------------------
# Fused kernel: BiLSTM recurrence + trigger head + interaction head
# ----------------------------------------------------------------------------
def _fused_kernel(pairs_ref,                                   # SMEM (P,2) int32
                  xx_ref, wih_ref, whh_ref, b_ref,             # LSTM
                  w1t_ref, b1t_ref, w2t_ref, b2t_ref,          # trigger head
                  w1i_ref, b1i_ref, w2i_ref, b2i_ref,          # interaction head
                  trig_ref, inter_ref,                         # outputs
                  lo_scr, feats_scr):                          # VMEM scratch
    S = xx_ref.shape[0]
    H2 = whh_ref.shape[0]          # 2H (both directions stacked on lanes)
    H = H2 // 2

    # ---- fused bidirectional LSTM -------------------------------------
    # One MXU pass: input->gate contributions for every step, both directions.
    # Gate lane layout (width 8H): [i_f i_b | f_f f_b | g_f g_b | o_f o_b].
    xg = jnp.dot(xx_ref[...], wih_ref[...],
                 preferred_element_type=jnp.float32) + b_ref[...]      # (S, 8H)

    whh = whh_ref[...]             # loop-invariant, hoisted (vreg resident)
    lane = lax.broadcasted_iota(jnp.int32, (1, 4 * H2), 1)
    cand_mask = (lane >= 2 * H2) & (lane < 3 * H2)

    h = jnp.zeros((1, H2), jnp.float32)
    c = jnp.zeros((1, H2), jnp.float32)

    # Fully unrolled: S is a small trace-time constant.
    # TODO(synk): switch to lax.fori_loop(..., unroll=4..8) with xg in VMEM
    #             scratch once S grows past ~64 (live ranges / compile time).
    for t in range(S):
        g = xg[t:t + 1, :] + jnp.dot(h, whh,
                                     preferred_element_type=jnp.float32)
        # Single tanh over all 8H lanes; sigmoid(x) = 0.5*tanh(x/2) + 0.5.
        gs = jnp.where(cand_mask, g, 0.5 * g)
        th = jnp.tanh(gs)
        act = jnp.where(cand_mask, th, 0.5 * th + 0.5)
        i_g = act[:, 0:H2]
        f_g = act[:, H2:2 * H2]
        cand = act[:, 2 * H2:3 * H2]
        o_g = act[:, 3 * H2:4 * H2]
        c = f_g * c + i_g * cand
        h = o_g * jnp.tanh(c)
        lo_scr[t:t + 1, :] = h     # one full-row store per step

    # Epilogue: forward half is already position-aligned; reverse the backward
    # half once with an anti-diagonal one-hot matmul (rows produced at step t
    # belong to position S-1-t).
    hs = lo_scr[...]                                           # (S, 2H)
    rows = lax.broadcasted_iota(jnp.int32, (S, S), 0)
    cols = lax.broadcasted_iota(jnp.int32, (S, S), 1)
    rev = (cols == (S - 1) - rows).astype(jnp.float32)
    bwd = jnp.dot(rev, hs[:, H:], preferred_element_type=jnp.float32)
    lstm_out = jnp.concatenate([hs[:, :H], bwd], axis=-1)      # (S, 2H)
    lo_scr[...] = lstm_out          # gatherable copy for the pair head

    # ---- trigger head ---------------------------------------------------
    trig_ref[...] = _mlp_log_softmax(lstm_out, w1t_ref, b1t_ref,
                                     w2t_ref, b2t_ref)

    # ---- interaction head -----------------------------------------------
    # Pair gather: indices live in SMEM (scalar prefetch); read rows of the
    # lstm_out scratch directly into a lane-dense (P, 4H) feature scratch.
    P = feats_scr.shape[0]
    for p in range(P):
        l = pairs_ref[p, 0]
        r = pairs_ref[p, 1]
        feats_scr[p:p + 1, 0:H2] = lo_scr[pl.ds(l, 1), :]
        feats_scr[p:p + 1, H2:2 * H2] = lo_scr[pl.ds(r, 1), :]
    inter_ref[...] = _mlp_log_softmax(feats_scr[...], w1i_ref, b1i_ref,
                                      w2i_ref, b2i_ref)


# ----------------------------------------------------------------------------
# Wrapper
# ----------------------------------------------------------------------------
def _run_fused(pp, xx, pairs):
    S = xx.shape[0]
    P = pairs.shape[0]
    H = pp["hid_dim"]
    ct_pad = pp["w2_trig_pad"].shape[1]
    ci_pad = pp["w2_int_pad"].shape[1]

    tensor_args = (xx, pp["wih_big"], pp["whh_big"], pp["b_big"],
                   pp["w1_trig"], pp["b1_trig"], pp["w2_trig_pad"], pp["b2_trig_pad"],
                   pp["w1_int"], pp["b1_int"], pp["w2_int_pad"], pp["b2_int_pad"])

    grid_spec = pltpu.PrefetchScalarGridSpec(
        num_scalar_prefetch=1,                       # pairs -> SMEM
        grid=(1,),
        in_specs=[pl.BlockSpec(a.shape, lambda i, prefetch: (0, 0))
                  for a in tensor_args],             # all tensor args are 2-D
        out_specs=(pl.BlockSpec((S, ct_pad), lambda i, prefetch: (0, 0)),
                   pl.BlockSpec((P, ci_pad), lambda i, prefetch: (0, 0))),
        scratch_shapes=[pltpu.VMEM((S, 2 * H), jnp.float32),
                        pltpu.VMEM((P, 4 * H), jnp.float32)],
    )
    return pl.pallas_call(
        _fused_kernel,
        out_shape=(jax.ShapeDtypeStruct((S, ct_pad), jnp.float32),
                   jax.ShapeDtypeStruct((P, ci_pad), jnp.float32)),
        grid_spec=grid_spec,
        compiler_params=pltpu.CompilerParams(
            dimension_semantics=("arbitrary",)),
    )(pairs, *tensor_args)


def prepare_params(p):
    """Hoist transposes / bias-adds / block packing / class padding."""
    H = p["hid_dim"]
    D = p["w_ih_f"].shape[1]

    # Input->gate block matrix (2D, 8H), gate-major lane layout.
    wih = jnp.zeros((2 * D, 8 * H), jnp.float32)
    # Hidden->gate block-diagonal matrix (2H, 8H).
    whh = jnp.zeros((2 * H, 8 * H), jnp.float32)
    bf = p["b_ih_f"] + p["b_hh_f"]
    bb = p["b_ih_b"] + p["b_hh_b"]
    bias = jnp.zeros((8 * H,), jnp.float32)
    for g in range(4):
        f_cols = slice(2 * g * H, (2 * g + 1) * H)        # forward gate g lanes
        b_cols = slice((2 * g + 1) * H, (2 * g + 2) * H)  # backward gate g lanes
        g_rows = slice(g * H, (g + 1) * H)                # PyTorch gate-g rows
        wih = wih.at[:D, f_cols].set(p["w_ih_f"][g_rows, :].T)
        wih = wih.at[D:, b_cols].set(p["w_ih_b"][g_rows, :].T)
        whh = whh.at[:H, f_cols].set(p["w_hh_f"][g_rows, :].T)
        whh = whh.at[H:, b_cols].set(p["w_hh_b"][g_rows, :].T)
        bias = bias.at[f_cols].set(bf[g_rows])
        bias = bias.at[b_cols].set(bb[g_rows])

    def pad_head2(w2, b2):
        # Pad class dim to a 128 multiple: zero weight columns + -1e30 bias so
        # the full-width log_softmax is exact on the real class lanes.
        c = w2.shape[0]
        cp = max(128, ((c + 127) // 128) * 128)
        w2p = jnp.zeros((w2.shape[1], cp), jnp.float32).at[:, :c].set(w2.T)
        b2p = jnp.full((cp,), -1e30, jnp.float32).at[:c].set(b2)
        return w2p, b2p[None, :], c

    w2t_pad, b2t_pad, n_trig = pad_head2(p["w2_trig"], p["b2_trig"])
    w2i_pad, b2i_pad, n_int = pad_head2(p["w2_int"], p["b2_int"])

    return {
        "hid_dim": H,
        "word_table": p["word_table"].astype(jnp.float32),
        "pos_table": p["pos_table"].astype(jnp.float32),
        "wih_big": wih, "whh_big": whh, "b_big": bias[None, :],
        "w1_trig": p["w1_trig"].T, "b1_trig": p["b1_trig"][None, :],
        "w2_trig_pad": w2t_pad, "b2_trig_pad": b2t_pad, "n_trig": n_trig,
        "w1_int": p["w1_int"].T, "b1_int": p["b1_int"][None, :],
        "w2_int_pad": w2i_pad, "b2_int_pad": b2i_pad, "n_int": n_int,
    }


def bilstm_forward(pp, tokens, pos_tags, pair_idxs, task):
    """Mirrors BiLSTM.forward; task in {'trigger', 'interaction', 'both'}.

    Both heads come from a single fused kernel launch (the LSTM recurrence —
    the dominant cost — is computed once); for a single-task call the other
    head's (negligible) cost is simply discarded.
    """
    # Embedding lookups + concat (plain-JAX glue).
    x = jnp.concatenate(
        [pp["word_table"][tokens], pp["pos_table"][pos_tags]], axis=-1
    ).astype(jnp.float32)                                  # (S, D)
    # Pack forward & time-reversed inputs side by side: row t = [x[t]|x[S-1-t]].
    xx = jnp.concatenate([x, x[::-1]], axis=-1)            # (S, 2D)
    pairs = pair_idxs.astype(jnp.int32)

    trig_pad, inter_pad = _run_fused(pp, xx, pairs)
    trig = trig_pad[:, :pp["n_trig"]]
    inter = inter_pad[:, :pp["n_int"]]
    if task == "trigger":
        return trig
    if task == "interaction":
        return inter
    return trig, inter


# ----------------------------------------------------------------------------
# Pure-JAX reference (for correctness check)
# ----------------------------------------------------------------------------
def _ref_lstm_dir(x, w_ih, w_hh, b_ih, b_hh, H):
    def step(carry, xt):
        h, c = carry
        g = xt @ w_ih.T + b_ih + h @ w_hh.T + b_hh
        i = jax.nn.sigmoid(g[:H])
        f = jax.nn.sigmoid(g[H:2 * H])
        gg = jnp.tanh(g[2 * H:3 * H])
        o = jax.nn.sigmoid(g[3 * H:])
        c = f * c + i * gg
        h = o * jnp.tanh(c)
        return (h, c), h
    (_, _), out = lax.scan(step, (jnp.zeros(H), jnp.zeros(H)), x)
    return out


def _ref_forward(p, tokens, pos_tags, pair_idxs, task):
    H = p["hid_dim"]
    x = jnp.concatenate([p["word_table"][tokens], p["pos_table"][pos_tags]], axis=-1)
    out_f = _ref_lstm_dir(x, p["w_ih_f"], p["w_hh_f"], p["b_ih_f"], p["b_hh_f"], H)
    out_b = _ref_lstm_dir(x[::-1], p["w_ih_b"], p["w_hh_b"], p["b_ih_b"], p["b_hh_b"], H)[::-1]
    lstm_out = jnp.concatenate([out_f, out_b], axis=-1)
    if task == "trigger":
        h = jnp.maximum(lstm_out @ p["w1_trig"].T + p["b1_trig"], 0.0)
        logits = h @ p["w2_trig"].T + p["b2_trig"]
    else:
        feats = jnp.concatenate([lstm_out[pair_idxs[:, 0]], lstm_out[pair_idxs[:, 1]]], axis=-1)
        h = jnp.maximum(feats @ p["w1_int"].T + p["b1_int"], 0.0)
        logits = h @ p["w2_int"].T + p["b2_int"]
    return jax.nn.log_softmax(logits, axis=1)


# ----------------------------------------------------------------------------
# Main
# ----------------------------------------------------------------------------
def _uniform(key, shape, scale=0.1):
    return jax.random.uniform(key, shape, jnp.float32, -scale, scale)


if __name__ == "__main__":
    VOCAB, WORD_DIM = 50, 16
    POS_VOCAB = 8            # pos_emb is square so len(pos_emb) == pos_emb_dim
    HID, SEQ = 32, 10
    TRIG_DIM, INTER_DIM = 6, 4
    D = WORD_DIM + POS_VOCAB

    keys = jax.random.split(jax.random.PRNGKey(0), 22)

    params = {
        "hid_dim": HID,
        "word_table": _uniform(keys[0], (VOCAB, WORD_DIM), 1.0),
        "pos_table": _uniform(keys[1], (POS_VOCAB, POS_VOCAB), 1.0),
        # nn.LSTM params (PyTorch layout, gate order i,f,g,o)
        "w_ih_f": _uniform(keys[2], (4 * HID, D)),
        "w_hh_f": _uniform(keys[3], (4 * HID, HID)),
        "b_ih_f": _uniform(keys[4], (4 * HID,)),
        "b_hh_f": _uniform(keys[5], (4 * HID,)),
        "w_ih_b": _uniform(keys[6], (4 * HID, D)),
        "w_hh_b": _uniform(keys[7], (4 * HID, HID)),
        "b_ih_b": _uniform(keys[8], (4 * HID,)),
        "b_hh_b": _uniform(keys[9], (4 * HID,)),
        # trigger head: Linear(2H, H//2) -> Linear(H//2, TRIG_DIM)
        "w1_trig": _uniform(keys[10], (HID // 2, 2 * HID)),
        "b1_trig": _uniform(keys[11], (HID // 2,)),
        "w2_trig": _uniform(keys[12], (TRIG_DIM, HID // 2)),
        "b2_trig": _uniform(keys[13], (TRIG_DIM,)),
        # interaction head: Linear(4H, H) -> Linear(H, INTER_DIM)
        "w1_int": _uniform(keys[14], (HID, 4 * HID)),
        "b1_int": _uniform(keys[15], (HID,)),
        "w2_int": _uniform(keys[16], (INTER_DIM, HID)),
        "b2_int": _uniform(keys[17], (INTER_DIM,)),
    }

    tokens = jax.random.randint(keys[18], (SEQ,), 0, VOCAB, dtype=jnp.int32)
    pos_tags = jax.random.randint(keys[19], (SEQ,), 0, POS_VOCAB, dtype=jnp.int32)
    pair_idxs = jnp.array([[0, 3], [2, 5], [1, 7]], dtype=jnp.int32)

    prepped = prepare_params(params)

    # One fused launch produces BOTH task outputs (recurrence computed once).
    trig_scores, inter_scores = bilstm_forward(
        prepped, tokens, pos_tags, pair_idxs, "both")
    jax.block_until_ready((trig_scores, inter_scores))

    # Correctness check against a pure-JAX reference.
    ref_trig = _ref_forward(params, tokens, pos_tags, pair_idxs, "trigger")
    ref_inter = _ref_forward(params, tokens, pos_tags, pair_idxs, "interaction")
    assert trig_scores.shape == (SEQ, TRIG_DIM)
    assert inter_scores.shape == (pair_idxs.shape[0], INTER_DIM)
    assert jnp.allclose(trig_scores, ref_trig, atol=2e-4, rtol=2e-4)
    assert jnp.allclose(inter_scores, ref_inter, atol=2e-4, rtol=2e-4)

    print("KERNEL_OK")
</pallas_src>

<mosaic_0001>
module attributes {stable_mosaic.version = 11 : i64} {
  func.func @_fused_kernel(%arg0: i32, %arg1: memref<3x2xi32, #tpu.memory_space<smem>>, %arg2: memref<10x48xf32, #tpu.memory_space<vmem>>, %arg3: memref<48x256xf32, #tpu.memory_space<vmem>>, %arg4: memref<64x256xf32, #tpu.memory_space<vmem>>, %arg5: memref<1x256xf32, #tpu.memory_space<vmem>>, %arg6: memref<64x16xf32, #tpu.memory_space<vmem>>, %arg7: memref<1x16xf32, #tpu.memory_space<vmem>>, %arg8: memref<16x128xf32, #tpu.memory_space<vmem>>, %arg9: memref<1x128xf32, #tpu.memory_space<vmem>>, %arg10: memref<128x32xf32, #tpu.memory_space<vmem>>, %arg11: memref<1x32xf32, #tpu.memory_space<vmem>>, %arg12: memref<32x128xf32, #tpu.memory_space<vmem>>, %arg13: memref<1x128xf32, #tpu.memory_space<vmem>>, %arg14: memref<10x128xf32, #tpu.memory_space<vmem>>, %arg15: memref<3x128xf32, #tpu.memory_space<vmem>>, %arg16: memref<10x64xf32, #tpu.memory_space<vmem>>, %arg17: memref<3x128xf32, #tpu.memory_space<vmem>>) attributes {dimension_semantics = [#tpu.dimension_semantics<arbitrary>], iteration_bounds = array<i64: 1>, scalar_prefetch = 1 : i64, scratch_operands = 2 : i64, tpu.core_type = #tpu.core_type<tc>, window_params = [{pipeline_mode = #tpu.pipeline_mode<synchronous>, transform_indices = @transform_0, window_bounds = array<i64: 10, 48>}, {pipeline_mode = #tpu.pipeline_mode<synchronous>, transform_indices = @transform_1, window_bounds = array<i64: 48, 256>}, {pipeline_mode = #tpu.pipeline_mode<synchronous>, transform_indices = @transform_2, window_bounds = array<i64: 64, 256>}, {pipeline_mode = #tpu.pipeline_mode<synchronous>, transform_indices = @transform_3, window_bounds = array<i64: 1, 256>}, {pipeline_mode = #tpu.pipeline_mode<synchronous>, transform_indices = @transform_4, window_bounds = array<i64: 64, 16>}, {pipeline_mode = #tpu.pipeline_mode<synchronous>, transform_indices = @transform_5, window_bounds = array<i64: 1, 16>}, {pipeline_mode = #tpu.pipeline_mode<synchronous>, transform_indices = @transform_6, window_bounds = array<i64: 16, 128>}, {pipeline_mode = #tpu.pipeline_mode<synchronous>, transform_indices = @transform_7, window_bounds = array<i64: 1, 128>}, {pipeline_mode = #tpu.pipeline_mode<synchronous>, transform_indices = @transform_8, window_bounds = array<i64: 128, 32>}, {pipeline_mode = #tpu.pipeline_mode<synchronous>, transform_indices = @transform_9, window_bounds = array<i64: 1, 32>}, {pipeline_mode = #tpu.pipeline_mode<synchronous>, transform_indices = @transform_10, window_bounds = array<i64: 32, 128>}, {pipeline_mode = #tpu.pipeline_mode<synchronous>, transform_indices = @transform_11, window_bounds = array<i64: 1, 128>}, {pipeline_mode = #tpu.pipeline_mode<synchronous>, transform_indices = @transform_12, window_bounds = array<i64: 10, 128>}, {pipeline_mode = #tpu.pipeline_mode<synchronous>, transform_indices = @transform_13, window_bounds = array<i64: 3, 128>}]} {
    %c0 = arith.constant 0 : index
    %c0_0 = arith.constant 0 : index
    %0 = vector.load %arg2[%c0, %c0_0] : memref<10x48xf32, #tpu.memory_space<vmem>>, vector<10x48xf32>
    %c0_1 = arith.constant 0 : index
    %c0_2 = arith.constant 0 : index
    %1 = vector.load %arg3[%c0_1, %c0_2] : memref<48x256xf32, #tpu.memory_space<vmem>>, vector<48x256xf32>
    %cst = arith.constant dense<0.000000e+00> : vector<10x256xf32>
    %2 = tpu.matmul %0, %1, %cst {dimension_numbers = #tpu.dot_dimension_numbers<[1], [0], [0], [1], [0, 0, 1, 1], [], []>} : vector<10x48xf32>, vector<48x256xf32>, vector<10x256xf32> -> vector<10x256xf32>
    %c0_3 = arith.constant 0 : index
    %c0_4 = arith.constant 0 : index
    %3 = vector.load %arg5[%c0_3, %c0_4] : memref<1x256xf32, #tpu.memory_space<vmem>>, vector<1x256xf32>
    %4 = vector.broadcast %3 : vector<1x256xf32> to vector<10x256xf32>
    %5 = arith.addf %2, %4 : vector<10x256xf32>
    %c0_5 = arith.constant 0 : index
    %c0_6 = arith.constant 0 : index
    %6 = vector.load %arg4[%c0_5, %c0_6] : memref<64x256xf32, #tpu.memory_space<vmem>>, vector<64x256xf32>
    %7 = tpu.iota {dimensions = array<i32: 1>} : vector<1x256xi32>
    %c128_i32 = arith.constant 128 : i32
    %8 = vector.broadcast %c128_i32 : i32 to vector<1x256xi32>
    %9 = arith.cmpi sge, %7, %8 : vector<1x256xi32>
    %c192_i32 = arith.constant 192 : i32
    %10 = vector.broadcast %c192_i32 : i32 to vector<1x256xi32>
    %11 = arith.cmpi slt, %7, %10 : vector<1x256xi32>
    %12 = arith.andi %9, %11 : vector<1x256xi1>
    %cst_7 = arith.constant 0.000000e+00 : f32
    %13 = vector.broadcast %cst_7 : f32 to vector<1x64xf32>
    %cst_8 = arith.constant 0.000000e+00 : f32
    %14 = vector.broadcast %cst_8 : f32 to vector<1x64xf32>
    %15 = vector.extract_strided_slice %5 {offsets = [0, 0], sizes = [1, 256], strides = [1, 1]} : vector<10x256xf32> to vector<1x256xf32>
    %cst_9 = arith.constant dense<0.000000e+00> : vector<1x256xf32>
    %16 = tpu.matmul %13, %6, %cst_9 {dimension_numbers = #tpu.dot_dimension_numbers<[1], [0], [0], [1], [0, 0, 1, 1], [], []>} : vector<1x64xf32>, vector<64x256xf32>, vector<1x256xf32> -> vector<1x256xf32>
    %17 = arith.addf %15, %16 : vector<1x256xf32>
    %cst_10 = arith.constant 5.000000e-01 : f32
    %18 = vector.broadcast %cst_10 : f32 to vector<1x256xf32>
    %19 = arith.mulf %18, %17 : vector<1x256xf32>
    %20 = arith.select %12, %17, %19 : vector<1x256xi1>, vector<1x256xf32>
    %21 = math.tanh %20 : vector<1x256xf32>
    %cst_11 = arith.constant 5.000000e-01 : f32
    %22 = vector.broadcast %cst_11 : f32 to vector<1x256xf32>
    %23 = arith.mulf %22, %21 : vector<1x256xf32>
    %cst_12 = arith.constant 5.000000e-01 : f32
    %24 = vector.broadcast %cst_12 : f32 to vector<1x256xf32>
    %25 = arith.addf %23, %24 : vector<1x256xf32>
    %26 = arith.select %12, %21, %25 : vector<1x256xi1>, vector<1x256xf32>
    %27 = vector.extract_strided_slice %26 {offsets = [0, 0], sizes = [1, 64], strides = [1, 1]} : vector<1x256xf32> to vector<1x64xf32>
    %28 = vector.extract_strided_slice %26 {offsets = [0, 64], sizes = [1, 64], strides = [1, 1]} : vector<1x256xf32> to vector<1x64xf32>
    %29 = vector.extract_strided_slice %26 {offsets = [0, 128], sizes = [1, 64], strides = [1, 1]} : vector<1x256xf32> to vector<1x64xf32>
    %30 = vector.extract_strided_slice %26 {offsets = [0, 192], sizes = [1, 64], strides = [1, 1]} : vector<1x256xf32> to vector<1x64xf32>
    %31 = arith.mulf %28, %14 : vector<1x64xf32>
    %32 = arith.mulf %27, %29 : vector<1x64xf32>
    %33 = arith.addf %31, %32 : vector<1x64xf32>
    %34 = math.tanh %33 : vector<1x64xf32>
    %35 = arith.mulf %30, %34 : vector<1x64xf32>
    %c0_13 = arith.constant 0 : index
    %c0_14 = arith.constant 0 : index
    %36 = vector.load %arg16[%c0_13, %c0_14] : memref<10x64xf32, #tpu.memory_space<vmem>>, vector<1x64xf32>
    tpu.vector_store %arg16[%c0_13, %c0_14], %35 {strides = array<i32>} : memref<10x64xf32, #tpu.memory_space<vmem>>, vector<1x64xf32>,
    %37 = vector.extract_strided_slice %5 {offsets = [1, 0], sizes = [1, 256], strides = [1, 1]} : vector<10x256xf32> to vector<1x256xf32>
    %cst_15 = arith.constant dense<0.000000e+00> : vector<1x256xf32>
    %38 = tpu.matmul %35, %6, %cst_15 {dimension_numbers = #tpu.dot_dimension_numbers<[1], [0], [0], [1], [0, 0, 1, 1], [], []>} : vector<1x64xf32>, vector<64x256xf32>, vector<1x256xf32> -> vector<1x256xf32>
    %39 = arith.addf %37, %38 : vector<1x256xf32>
    %cst_16 = arith.constant 5.000000e-01 : f32
    %40 = vector.broadcast %cst_16 : f32 to vector<1x256xf32>
    %41 = arith.mulf %40, %39 : vector<1x256xf32>
    %42 = arith.select %12, %39, %41 : vector<1x256xi1>, vector<1x256xf32>
    %43 = math.tanh %42 : vector<1x256xf32>
    %cst_17 = arith.constant 5.000000e-01 : f32
    %44 = vector.broadcast %cst_17 : f32 to vector<1x256xf32>
    %45 = arith.mulf %44, %43 : vector<1x256xf32>
    %cst_18 = arith.constant 5.000000e-01 : f32
    %46 = vector.broadcast %cst_18 : f32 to vector<1x256xf32>
    %47 = arith.addf %45, %46 : vector<1x256xf32>
    %48 = arith.select %12, %43, %47 : vector<1x256xi1>, vector<1x256xf32>
    %49 = vector.extract_strided_slice %48 {offsets = [0, 0], sizes = [1, 64], strides = [1, 1]} : vector<1x256xf32> to vector<1x64xf32>
    %50 = vector.extract_strided_slice %48 {offsets = [0, 64], sizes = [1, 64], strides = [1, 1]} : vector<1x256xf32> to vector<1x64xf32>
    %51 = vector.extract_strided_slice %48 {offsets = [0, 128], sizes = [1, 64], strides = [1, 1]} : vector<1x256xf32> to vector<1x64xf32>
    %52 = vector.extract_strided_slice %48 {offsets = [0, 192], sizes = [1, 64], strides = [1, 1]} : vector<1x256xf32> to vector<1x64xf32>
    %53 = arith.mulf %50, %33 : vector<1x64xf32>
    %54 = arith.mulf %49, %51 : vector<1x64xf32>
    %55 = arith.addf %53, %54 : vector<1x64xf32>
    %56 = math.tanh %55 : vector<1x64xf32>
    %57 = arith.mulf %52, %56 : vector<1x64xf32>
    %c1 = arith.constant 1 : index
    %c0_19 = arith.constant 0 : index
    %58 = vector.load %arg16[%c1, %c0_19] : memref<10x64xf32, #tpu.memory_space<vmem>>, vector<1x64xf32>
    tpu.vector_store %arg16[%c1, %c0_19], %57 {strides = array<i32>} : memref<10x64xf32, #tpu.memory_space<vmem>>, vector<1x64xf32>,
    %59 = vector.extract_strided_slice %5 {offsets = [2, 0], sizes = [1, 256], strides = [1, 1]} : vector<10x256xf32> to vector<1x256xf32>
    %cst_20 = arith.constant dense<0.000000e+00> : vector<1x256xf32>
    %60 = tpu.matmul %57, %6, %cst_20 {dimension_numbers = #tpu.dot_dimension_numbers<[1], [0], [0], [1], [0, 0, 1, 1], [], []>} : vector<1x64xf32>, vector<64x256xf32>, vector<1x256xf32> -> vector<1x256xf32>
    %61 = arith.addf %59, %60 : vector<1x256xf32>
    %cst_21 = arith.constant 5.000000e-01 : f32
    %62 = vector.broadcast %cst_21 : f32 to vector<1x256xf32>
    %63 = arith.mulf %62, %61 : vector<1x256xf32>
    %64 = arith.select %12, %61, %63 : vector<1x256xi1>, vector<1x256xf32>
    %65 = math.tanh %64 : vector<1x256xf32>
    %cst_22 = arith.constant 5.000000e-01 : f32
    %66 = vector.broadcast %cst_22 : f32 to vector<1x256xf32>
    %67 = arith.mulf %66, %65 : vector<1x256xf32>
    %cst_23 = arith.constant 5.000000e-01 : f32
    %68 = vector.broadcast %cst_23 : f32 to vector<1x256xf32>
    %69 = arith.addf %67, %68 : vector<1x256xf32>
    %70 = arith.select %12, %65, %69 : vector<1x256xi1>, vector<1x256xf32>
    %71 = vector.extract_strided_slice %70 {offsets = [0, 0], sizes = [1, 64], strides = [1, 1]} : vector<1x256xf32> to vector<1x64xf32>
    %72 = vector.extract_strided_slice %70 {offsets = [0, 64], sizes = [1, 64], strides = [1, 1]} : vector<1x256xf32> to vector<1x64xf32>
    %73 = vector.extract_strided_slice %70 {offsets = [0, 128], sizes = [1, 64], strides = [1, 1]} : vector<1x256xf32> to vector<1x64xf32>
    %74 = vector.extract_strided_slice %70 {offsets = [0, 192], sizes = [1, 64], strides = [1, 1]} : vector<1x256xf32> to vector<1x64xf32>
    %75 = arith.mulf %72, %55 : vector<1x64xf32>
    %76 = arith.mulf %71, %73 : vector<1x64xf32>
    %77 = arith.addf %75, %76 : vector<1x64xf32>
    %78 = math.tanh %77 : vector<1x64xf32>
    %79 = arith.mulf %74, %78 : vector<1x64xf32>
    %c2 = arith.constant 2 : index
    %c0_24 = arith.constant 0 : index
    %80 = vector.load %arg16[%c2, %c0_24] : memref<10x64xf32, #tpu.memory_space<vmem>>, vector<1x64xf32>
    tpu.vector_store %arg16[%c2, %c0_24], %79 {strides = array<i32>} : memref<10x64xf32, #tpu.memory_space<vmem>>, vector<1x64xf32>,
    %81 = vector.extract_strided_slice %5 {offsets = [3, 0], sizes = [1, 256], strides = [1, 1]} : vector<10x256xf32> to vector<1x256xf32>
    %cst_25 = arith.constant dense<0.000000e+00> : vector<1x256xf32>
    %82 = tpu.matmul %79, %6, %cst_25 {dimension_numbers = #tpu.dot_dimension_numbers<[1], [0], [0], [1], [0, 0, 1, 1], [], []>} : vector<1x64xf32>, vector<64x256xf32>, vector<1x256xf32> -> vector<1x256xf32>
    %83 = arith.addf %81, %82 : vector<1x256xf32>
    %cst_26 = arith.constant 5.000000e-01 : f32
    %84 = vector.broadcast %cst_26 : f32 to vector<1x256xf32>
    %85 = arith.mulf %84, %83 : vector<1x256xf32>
    %86 = arith.select %12, %83, %85 : vector<1x256xi1>, vector<1x256xf32>
    %87 = math.tanh %86 : vector<1x256xf32>
    %cst_27 = arith.constant 5.000000e-01 : f32
    %88 = vector.broadcast %cst_27 : f32 to vector<1x256xf32>
    %89 = arith.mulf %88, %87 : vector<1x256xf32>
    %cst_28 = arith.constant 5.000000e-01 : f32
    %90 = vector.broadcast %cst_28 : f32 to vector<1x256xf32>
    %91 = arith.addf %89, %90 : vector<1x256xf32>
    %92 = arith.select %12, %87, %91 : vector<1x256xi1>, vector<1x256xf32>
    %93 = vector.extract_strided_slice %92 {offsets = [0, 0], sizes = [1, 64], strides = [1, 1]} : vector<1x256xf32> to vector<1x64xf32>
    %94 = vector.extract_strided_slice %92 {offsets = [0, 64], sizes = [1, 64], strides = [1, 1]} : vector<1x256xf32> to vector<1x64xf32>
    %95 = vector.extract_strided_slice %92 {offsets = [0, 128], sizes = [1, 64], strides = [1, 1]} : vector<1x256xf32> to vector<1x64xf32>
    %96 = vector.extract_strided_slice %92 {offsets = [0, 192], sizes = [1, 64], strides = [1, 1]} : vector<1x256xf32> to vector<1x64xf32>
    %97 = arith.mulf %94, %77 : vector<1x64xf32>
    %98 = arith.mulf %93, %95 : vector<1x64xf32>
    %99 = arith.addf %97, %98 : vector<1x64xf32>
    %100 = math.tanh %99 : vector<1x64xf32>
    %101 = arith.mulf %96, %100 : vector<1x64xf32>
    %c3 = arith.constant 3 : index
    %c0_29 = arith.constant 0 : index
    %102 = vector.load %arg16[%c3, %c0_29] : memref<10x64xf32, #tpu.memory_space<vmem>>, vector<1x64xf32>
    tpu.vector_store %arg16[%c3, %c0_29], %101 {strides = array<i32>} : memref<10x64xf32, #tpu.memory_space<vmem>>, vector<1x64xf32>,
    %103 = vector.extract_strided_slice %5 {offsets = [4, 0], sizes = [1, 256], strides = [1, 1]} : vector<10x256xf32> to vector<1x256xf32>
    %cst_30 = arith.constant dense<0.000000e+00> : vector<1x256xf32>
    %104 = tpu.matmul %101, %6, %cst_30 {dimension_numbers = #tpu.dot_dimension_numbers<[1], [0], [0], [1], [0, 0, 1, 1], [], []>} : vector<1x64xf32>, vector<64x256xf32>, vector<1x256xf32> -> vector<1x256xf32>
    %105 = arith.addf %103, %104 : vector<1x256xf32>
    %cst_31 = arith.constant 5.000000e-01 : f32
    %106 = vector.broadcast %cst_31 : f32 to vector<1x256xf32>
    %107 = arith.mulf %106, %105 : vector<1x256xf32>
    %108 = arith.select %12, %105, %107 : vector<1x256xi1>, vector<1x256xf32>
    %109 = math.tanh %108 : vector<1x256xf32>
    %cst_32 = arith.constant 5.000000e-01 : f32
    %110 = vector.broadcast %cst_32 : f32 to vector<1x256xf32>
    %111 = arith.mulf %110, %109 : vector<1x256xf32>
    %cst_33 = arith.constant 5.000000e-01 : f32
    %112 = vector.broadcast %cst_33 : f32 to vector<1x256xf32>
    %113 = arith.addf %111, %112 : vector<1x256xf32>
    %114 = arith.select %12, %109, %113 : vector<1x256xi1>, vector<1x256xf32>
    %115 = vector.extract_strided_slice %114 {offsets = [0, 0], sizes = [1, 64], strides = [1, 1]} : vector<1x256xf32> to vector<1x64xf32>
    %116 = vector.extract_strided_slice %114 {offsets = [0, 64], sizes = [1, 64], strides = [1, 1]} : vector<1x256xf32> to vector<1x64xf32>
    %117 = vector.extract_strided_slice %114 {offsets = [0, 128], sizes = [1, 64], strides = [1, 1]} : vector<1x256xf32> to vector<1x64xf32>
    %118 = vector.extract_strided_slice %114 {offsets = [0, 192], sizes = [1, 64], strides = [1, 1]} : vector<1x256xf32> to vector<1x64xf32>
    %119 = arith.mulf %116, %99 : vector<1x64xf32>
    %120 = arith.mulf %115, %117 : vector<1x64xf32>
    %121 = arith.addf %119, %120 : vector<1x64xf32>
    %122 = math.tanh %121 : vector<1x64xf32>
    %123 = arith.mulf %118, %122 : vector<1x64xf32>
    %c4 = arith.constant 4 : index
    %c0_34 = arith.constant 0 : index
    %124 = vector.load %arg16[%c4, %c0_34] : memref<10x64xf32, #tpu.memory_space<vmem>>, vector<1x64xf32>
    tpu.vector_store %arg16[%c4, %c0_34], %123 {strides = array<i32>} : memref<10x64xf32, #tpu.memory_space<vmem>>, vector<1x64xf32>,
    %125 = vector.extract_strided_slice %5 {offsets = [5, 0], sizes = [1, 256], strides = [1, 1]} : vector<10x256xf32> to vector<1x256xf32>
    %cst_35 = arith.constant dense<0.000000e+00> : vector<1x256xf32>
    %126 = tpu.matmul %123, %6, %cst_35 {dimension_numbers = #tpu.dot_dimension_numbers<[1], [0], [0], [1], [0, 0, 1, 1], [], []>} : vector<1x64xf32>, vector<64x256xf32>, vector<1x256xf32> -> vector<1x256xf32>
    %127 = arith.addf %125, %126 : vector<1x256xf32>
    %cst_36 = arith.constant 5.000000e-01 : f32
    %128 = vector.broadcast %cst_36 : f32 to vector<1x256xf32>
    %129 = arith.mulf %128, %127 : vector<1x256xf32>
    %130 = arith.select %12, %127, %129 : vector<1x256xi1>, vector<1x256xf32>
    %131 = math.tanh %130 : vector<1x256xf32>
    %cst_37 = arith.constant 5.000000e-01 : f32
    %132 = vector.broadcast %cst_37 : f32 to vector<1x256xf32>
    %133 = arith.mulf %132, %131 : vector<1x256xf32>
    %cst_38 = arith.constant 5.000000e-01 : f32
    %134 = vector.broadcast %cst_38 : f32 to vector<1x256xf32>
    %135 = arith.addf %133, %134 : vector<1x256xf32>
    %136 = arith.select %12, %131, %135 : vector<1x256xi1>, vector<1x256xf32>
    %137 = vector.extract_strided_slice %136 {offsets = [0, 0], sizes = [1, 64], strides = [1, 1]} : vector<1x256xf32> to vector<1x64xf32>
    %138 = vector.extract_strided_slice %136 {offsets = [0, 64], sizes = [1, 64], strides = [1, 1]} : vector<1x256xf32> to vector<1x64xf32>
    %139 = vector.extract_strided_slice %136 {offsets = [0, 128], sizes = [1, 64], strides = [1, 1]} : vector<1x256xf32> to vector<1x64xf32>
    %140 = vector.extract_strided_slice %136 {offsets = [0, 192], sizes = [1, 64], strides = [1, 1]} : vector<1x256xf32> to vector<1x64xf32>
    %141 = arith.mulf %138, %121 : vector<1x64xf32>
    %142 = arith.mulf %137, %139 : vector<1x64xf32>
    %143 = arith.addf %141, %142 : vector<1x64xf32>
    %144 = math.tanh %143 : vector<1x64xf32>
    %145 = arith.mulf %140, %144 : vector<1x64xf32>
    %c5 = arith.constant 5 : index
    %c0_39 = arith.constant 0 : index
    %146 = vector.load %arg16[%c5, %c0_39] : memref<10x64xf32, #tpu.memory_space<vmem>>, vector<1x64xf32>
    tpu.vector_store %arg16[%c5, %c0_39], %145 {strides = array<i32>} : memref<10x64xf32, #tpu.memory_space<vmem>>, vector<1x64xf32>,
    %147 = vector.extract_strided_slice %5 {offsets = [6, 0], sizes = [1, 256], strides = [1, 1]} : vector<10x256xf32> to vector<1x256xf32>
    %cst_40 = arith.constant dense<0.000000e+00> : vector<1x256xf32>
    %148 = tpu.matmul %145, %6, %cst_40 {dimension_numbers = #tpu.dot_dimension_numbers<[1], [0], [0], [1], [0, 0, 1, 1], [], []>} : vector<1x64xf32>, vector<64x256xf32>, vector<1x256xf32> -> vector<1x256xf32>
    %149 = arith.addf %147, %148 : vector<1x256xf32>
    %cst_41 = arith.constant 5.000000e-01 : f32
    %150 = vector.broadcast %cst_41 : f32 to vector<1x256xf32>
    %151 = arith.mulf %150, %149 : vector<1x256xf32>
    %152 = arith.select %12, %149, %151 : vector<1x256xi1>, vector<1x256xf32>
    %153 = math.tanh %152 : vector<1x256xf32>
    %cst_42 = arith.constant 5.000000e-01 : f32
    %154 = vector.broadcast %cst_42 : f32 to vector<1x256xf32>
    %155 = arith.mulf %154, %153 : vector<1x256xf32>
    %cst_43 = arith.constant 5.000000e-01 : f32
    %156 = vector.broadcast %cst_43 : f32 to vector<1x256xf32>
    %157 = arith.addf %155, %156 : vector<1x256xf32>
    %158 = arith.select %12, %153, %157 : vector<1x256xi1>, vector<1x256xf32>
    %159 = vector.extract_strided_slice %158 {offsets = [0, 0], sizes = [1, 64], strides = [1, 1]} : vector<1x256xf32> to vector<1x64xf32>
    %160 = vector.extract_strided_slice %158 {offsets = [0, 64], sizes = [1, 64], strides = [1, 1]} : vector<1x256xf32> to vector<1x64xf32>
    %161 = vector.extract_strided_slice %158 {offsets = [0, 128], sizes = [1, 64], strides = [1, 1]} : vector<1x256xf32> to vector<1x64xf32>
    %162 = vector.extract_strided_slice %158 {offsets = [0, 192], sizes = [1, 64], strides = [1, 1]} : vector<1x256xf32> to vector<1x64xf32>
    %163 = arith.mulf %160, %143 : vector<1x64xf32>
    %164 = arith.mulf %159, %161 : vector<1x64xf32>
    %165 = arith.addf %163, %164 : vector<1x64xf32>
    %166 = math.tanh %165 : vector<1x64xf32>
    %167 = arith.mulf %162, %166 : vector<1x64xf32>
    %c6 = arith.constant 6 : index
    %c0_44 = arith.constant 0 : index
    %168 = vector.load %arg16[%c6, %c0_44] : memref<10x64xf32, #tpu.memory_space<vmem>>, vector<1x64xf32>
    tpu.vector_store %arg16[%c6, %c0_44], %167 {strides = array<i32>} : memref<10x64xf32, #tpu.memory_space<vmem>>, vector<1x64xf32>,
    %169 = vector.extract_strided_slice %5 {offsets = [7, 0], sizes = [1, 256], strides = [1, 1]} : vector<10x256xf32> to vector<1x256xf32>
    %cst_45 = arith.constant dense<0.000000e+00> : vector<1x256xf32>
    %170 = tpu.matmul %167, %6, %cst_45 {dimension_numbers = #tpu.dot_dimension_numbers<[1], [0], [0], [1], [0, 0, 1, 1], [], []>} : vector<1x64xf32>, vector<64x256xf32>, vector<1x256xf32> -> vector<1x256xf32>
    %171 = arith.addf %169, %170 : vector<1x256xf32>
    %cst_46 = arith.constant 5.000000e-01 : f32
    %172 = vector.broadcast %cst_46 : f32 to vector<1x256xf32>
    %173 = arith.mulf %172, %171 : vector<1x256xf32>
    %174 = arith.select %12, %171, %173 : vector<1x256xi1>, vector<1x256xf32>
    %175 = math.tanh %174 : vector<1x256xf32>
    %cst_47 = arith.constant 5.000000e-01 : f32
    %176 = vector.broadcast %cst_47 : f32 to vector<1x256xf32>
    %177 = arith.mulf %176, %175 : vector<1x256xf32>
    %cst_48 = arith.constant 5.000000e-01 : f32
    %178 = vector.broadcast %cst_48 : f32 to vector<1x256xf32>
    %179 = arith.addf %177, %178 : vector<1x256xf32>
    %180 = arith.select %12, %175, %179 : vector<1x256xi1>, vector<1x256xf32>
    %181 = vector.extract_strided_slice %180 {offsets = [0, 0], sizes = [1, 64], strides = [1, 1]} : vector<1x256xf32> to vector<1x64xf32>
    %182 = vector.extract_strided_slice %180 {offsets = [0, 64], sizes = [1, 64], strides = [1, 1]} : vector<1x256xf32> to vector<1x64xf32>
    %183 = vector.extract_strided_slice %180 {offsets = [0, 128], sizes = [1, 64], strides = [1, 1]} : vector<1x256xf32> to vector<1x64xf32>
    %184 = vector.extract_strided_slice %180 {offsets = [0, 192], sizes = [1, 64], strides = [1, 1]} : vector<1x256xf32> to vector<1x64xf32>
    %185 = arith.mulf %182, %165 : vector<1x64xf32>
    %186 = arith.mulf %181, %183 : vector<1x64xf32>
    %187 = arith.addf %185, %186 : vector<1x64xf32>
    %188 = math.tanh %187 : vector<1x64xf32>
    %189 = arith.mulf %184, %188 : vector<1x64xf32>
    %c7 = arith.constant 7 : index
    %c0_49 = arith.constant 0 : index
    %190 = vector.load %arg16[%c7, %c0_49] : memref<10x64xf32, #tpu.memory_space<vmem>>, vector<1x64xf32>
    tpu.vector_store %arg16[%c7, %c0_49], %189 {strides = array<i32>} : memref<10x64xf32, #tpu.memory_space<vmem>>, vector<1x64xf32>,
    %191 = vector.extract_strided_slice %5 {offsets = [8, 0], sizes = [1, 256], strides = [1, 1]} : vector<10x256xf32> to vector<1x256xf32>
    %cst_50 = arith.constant dense<0.000000e+00> : vector<1x256xf32>
    %192 = tpu.matmul %189, %6, %cst_50 {dimension_numbers = #tpu.dot_dimension_numbers<[1], [0], [0], [1], [0, 0, 1, 1], [], []>} : vector<1x64xf32>, vector<64x256xf32>, vector<1x256xf32> -> vector<1x256xf32>
    %193 = arith.addf %191, %192 : vector<1x256xf32>
    %cst_51 = arith.constant 5.000000e-01 : f32
    %194 = vector.broadcast %cst_51 : f32 to vector<1x256xf32>
    %195 = arith.mulf %194, %193 : vector<1x256xf32>
    %196 = arith.select %12, %193, %195 : vector<1x256xi1>, vector<1x256xf32>
    %197 = math.tanh %196 : vector<1x256xf32>
    %cst_52 = arith.constant 5.000000e-01 : f32
    %198 = vector.broadcast %cst_52 : f32 to vector<1x256xf32>
    %199 = arith.mulf %198, %197 : vector<1x256xf32>
    %cst_53 = arith.constant 5.000000e-01 : f32
    %200 = vector.broadcast %cst_53 : f32 to vector<1x256xf32>
    %201 = arith.addf %199, %200 : vector<1x256xf32>
    %202 = arith.select %12, %197, %201 : vector<1x256xi1>, vector<1x256xf32>
    %203 = vector.extract_strided_slice %202 {offsets = [0, 0], sizes = [1, 64], strides = [1, 1]} : vector<1x256xf32> to vector<1x64xf32>
    %204 = vector.extract_strided_slice %202 {offsets = [0, 64], sizes = [1, 64], strides = [1, 1]} : vector<1x256xf32> to vector<1x64xf32>
    %205 = vector.extract_strided_slice %202 {offsets = [0, 128], sizes = [1, 64], strides = [1, 1]} : vector<1x256xf32> to vector<1x64xf32>
    %206 = vector.extract_strided_slice %202 {offsets = [0, 192], sizes = [1, 64], strides = [1, 1]} : vector<1x256xf32> to vector<1x64xf32>
    %207 = arith.mulf %204, %187 : vector<1x64xf32>
    %208 = arith.mulf %203, %205 : vector<1x64xf32>
    %209 = arith.addf %207, %208 : vector<1x64xf32>
    %210 = math.tanh %209 : vector<1x64xf32>
    %211 = arith.mulf %206, %210 : vector<1x64xf32>
    %c8 = arith.constant 8 : index
    %c0_54 = arith.constant 0 : index
    %212 = vector.load %arg16[%c8, %c0_54] : memref<10x64xf32, #tpu.memory_space<vmem>>, vector<1x64xf32>
    tpu.vector_store %arg16[%c8, %c0_54], %211 {strides = array<i32>} : memref<10x64xf32, #tpu.memory_space<vmem>>, vector<1x64xf32>,
    %213 = vector.extract_strided_slice %5 {offsets = [9, 0], sizes = [1, 256], strides = [1, 1]} : vector<10x256xf32> to vector<1x256xf32>
    %cst_55 = arith.constant dense<0.000000e+00> : vector<1x256xf32>
    %214 = tpu.matmul %211, %6, %cst_55 {dimension_numbers = #tpu.dot_dimension_numbers<[1], [0], [0], [1], [0, 0, 1, 1], [], []>} : vector<1x64xf32>, vector<64x256xf32>, vector<1x256xf32> -> vector<1x256xf32>
    %215 = arith.addf %213, %214 : vector<1x256xf32>
    %cst_56 = arith.constant 5.000000e-01 : f32
    %216 = vector.broadcast %cst_56 : f32 to vector<1x256xf32>
    %217 = arith.mulf %216, %215 : vector<1x256xf32>
    %218 = arith.select %12, %215, %217 : vector<1x256xi1>, vector<1x256xf32>
    %219 = math.tanh %218 : vector<1x256xf32>
    %cst_57 = arith.constant 5.000000e-01 : f32
    %220 = vector.broadcast %cst_57 : f32 to vector<1x256xf32>
    %221 = arith.mulf %220, %219 : vector<1x256xf32>
    %cst_58 = arith.constant 5.000000e-01 : f32
    %222 = vector.broadcast %cst_58 : f32 to vector<1x256xf32>
    %223 = arith.addf %221, %222 : vector<1x256xf32>
    %224 = arith.select %12, %219, %223 : vector<1x256xi1>, vector<1x256xf32>
    %225 = vector.extract_strided_slice %224 {offsets = [0, 0], sizes = [1, 64], strides = [1, 1]} : vector<1x256xf32> to vector<1x64xf32>
    %226 = vector.extract_strided_slice %224 {offsets = [0, 64], sizes = [1, 64], strides = [1, 1]} : vector<1x256xf32> to vector<1x64xf32>
    %227 = vector.extract_strided_slice %224 {offsets = [0, 128], sizes = [1, 64], strides = [1, 1]} : vector<1x256xf32> to vector<1x64xf32>
    %228 = vector.extract_strided_slice %224 {offsets = [0, 192], sizes = [1, 64], strides = [1, 1]} : vector<1x256xf32> to vector<1x64xf32>
    %229 = arith.mulf %226, %209 : vector<1x64xf32>
    %230 = arith.mulf %225, %227 : vector<1x64xf32>
    %231 = arith.addf %229, %230 : vector<1x64xf32>
    %232 = math.tanh %231 : vector<1x64xf32>
    %233 = arith.mulf %228, %232 : vector<1x64xf32>
    %c9 = arith.constant 9 : index
    %c0_59 = arith.constant 0 : index
    %234 = vector.load %arg16[%c9, %c0_59] : memref<10x64xf32, #tpu.memory_space<vmem>>, vector<1x64xf32>
    tpu.vector_store %arg16[%c9, %c0_59], %233 {strides = array<i32>} : memref<10x64xf32, #tpu.memory_space<vmem>>, vector<1x64xf32>,
    %c0_60 = arith.constant 0 : index
    %c0_61 = arith.constant 0 : index
    %235 = vector.load %arg16[%c0_60, %c0_61] : memref<10x64xf32, #tpu.memory_space<vmem>>, vector<10x64xf32>
    %236 = tpu.iota {dimensions = array<i32: 0>} : vector<10x10xi32>
    %237 = tpu.iota {dimensions = array<i32: 1>} : vector<10x10xi32>
    %c9_i32 = arith.constant 9 : i32
    %238 = vector.broadcast %c9_i32 : i32 to vector<10x10xi32>
    %239 = arith.subi %238, %236 : vector<10x10xi32>
    %240 = arith.cmpi eq, %237, %239 : vector<10x10xi32>
    %241 = arith.extui %240 : vector<10x10xi1> to vector<10x10xi32>
    %242 = arith.sitofp %241 : vector<10x10xi32> to vector<10x10xf32>
    %243 = vector.extract_strided_slice %235 {offsets = [0, 32], sizes = [10, 32], strides = [1, 1]} : vector<10x64xf32> to vector<10x32xf32>
    %cst_62 = arith.constant dense<0.000000e+00> : vector<10x32xf32>
    %244 = tpu.matmul %242, %243, %cst_62 {dimension_numbers = #tpu.dot_dimension_numbers<[1], [0], [0], [1], [0, 0, 1, 1], [], []>} : vector<10x10xf32>, vector<10x32xf32>, vector<10x32xf32> -> vector<10x32xf32>
    %245 = vector.extract_strided_slice %235 {offsets = [0, 0], sizes = [10, 32], strides = [1, 1]} : vector<10x64xf32> to vector<10x32xf32>
    %246 = tpu.concatenate %245, %244 in 1 : vector<10x32xf32>, vector<10x32xf32> -> vector<10x64xf32>
    %c0_63 = arith.constant 0 : index
    %c0_64 = arith.constant 0 : index
    %247 = vector.load %arg16[%c0_63, %c0_64] : memref<10x64xf32, #tpu.memory_space<vmem>>, vector<10x64xf32>
    tpu.vector_store %arg16[%c0_63, %c0_64], %246 {strides = array<i32>} : memref<10x64xf32, #tpu.memory_space<vmem>>, vector<10x64xf32>,
    %c0_65 = arith.constant 0 : index
    %c0_66 = arith.constant 0 : index
    %248 = vector.load %arg6[%c0_65, %c0_66] : memref<64x16xf32, #tpu.memory_space<vmem>>, vector<64x16xf32>
    %cst_67 = arith.constant dense<0.000000e+00> : vector<10x16xf32>
    %249 = tpu.matmul %246, %248, %cst_67 {dimension_numbers = #tpu.dot_dimension_numbers<[1], [0], [0], [1], [0, 0, 1, 1], [], []>} : vector<10x64xf32>, vector<64x16xf32>, vector<10x16xf32> -> vector<10x16xf32>
    %c0_68 = arith.constant 0 : index
    %c0_69 = arith.constant 0 : index
    %250 = vector.load %arg7[%c0_68, %c0_69] : memref<1x16xf32, #tpu.memory_space<vmem>>, vector<1x16xf32>
    %251 = vector.broadcast %250 : vector<1x16xf32> to vector<10x16xf32>
    %252 = arith.addf %249, %251 : vector<10x16xf32>
    %cst_70 = arith.constant 0.000000e+00 : f32
    %253 = vector.broadcast %cst_70 : f32 to vector<10x16xf32>
    %254 = arith.maximumf %252, %253 : vector<10x16xf32>
    %c0_71 = arith.constant 0 : index
    %c0_72 = arith.constant 0 : index
    %255 = vector.load %arg8[%c0_71, %c0_72] : memref<16x128xf32, #tpu.memory_space<vmem>>, vector<16x128xf32>
    %cst_73 = arith.constant dense<0.000000e+00> : vector<10x128xf32>
    %256 = tpu.matmul %254, %255, %cst_73 {dimension_numbers = #tpu.dot_dimension_numbers<[1], [0], [0], [1], [0, 0, 1, 1], [], []>} : vector<10x16xf32>, vector<16x128xf32>, vector<10x128xf32> -> vector<10x128xf32>
    %c0_74 = arith.constant 0 : index
    %c0_75 = arith.constant 0 : index
    %257 = vector.load %arg9[%c0_74, %c0_75] : memref<1x128xf32, #tpu.memory_space<vmem>>, vector<1x128xf32>
    %258 = vector.broadcast %257 : vector<1x128xf32> to vector<10x128xf32>
    %259 = arith.addf %256, %258 : vector<10x128xf32>
    %cst_76 = arith.constant dense<0xFF800000> : vector<10xf32>
    %260 = vector.multi_reduction <maximumf>, %259, %cst_76 [1] : vector<10x128xf32> to vector<10xf32>
    %261 = vector.shape_cast %260 : vector<10xf32> to vector<10x1xf32>
    %262 = vector.broadcast %261 : vector<10x1xf32> to vector<10x128xf32>
    %263 = arith.subf %259, %262 : vector<10x128xf32>
    %264 = math.exp %263 : vector<10x128xf32>
    %cst_77 = arith.constant dense<0.000000e+00> : vector<10xf32>
    %265 = vector.multi_reduction <add>, %264, %cst_77 [1] : vector<10x128xf32> to vector<10xf32>
    %266 = vector.shape_cast %265 : vector<10xf32> to vector<10x1xf32>
    %267 = math.log %266 : vector<10x1xf32>
    %268 = vector.broadcast %267 : vector<10x1xf32> to vector<10x128xf32>
    %269 = arith.subf %263, %268 : vector<10x128xf32>
    %c0_78 = arith.constant 0 : index
    %c0_79 = arith.constant 0 : index
    %270 = vector.load %arg14[%c0_78, %c0_79] : memref<10x128xf32, #tpu.memory_space<vmem>>, vector<10x128xf32>
    tpu.vector_store %arg14[%c0_78, %c0_79], %269 {strides = array<i32>} : memref<10x128xf32, #tpu.memory_space<vmem>>, vector<10x128xf32>,
    %c0_80 = arith.constant 0 : index
    %c0_81 = arith.constant 0 : index
    %271 = memref.load %arg1[%c0_80, %c0_81] : memref<3x2xi32, #tpu.memory_space<smem>>
    %c0_82 = arith.constant 0 : index
    %c1_83 = arith.constant 1 : index
    %272 = memref.load %arg1[%c0_82, %c1_83] : memref<3x2xi32, #tpu.memory_space<smem>>
    %273 = arith.index_cast %271 : i32 to index
    %c0_84 = arith.constant 0 : index
    %274 = vector.load %arg16[%273, %c0_84] : memref<10x64xf32, #tpu.memory_space<vmem>>, vector<1x64xf32>
    %c0_85 = arith.constant 0 : index
    %c0_86 = arith.constant 0 : index
    %275 = vector.load %arg17[%c0_85, %c0_86] : memref<3x128xf32, #tpu.memory_space<vmem>>, vector<1x64xf32>
    tpu.vector_store %arg17[%c0_85, %c0_86], %274 {strides = array<i32>} : memref<3x128xf32, #tpu.memory_space<vmem>>, vector<1x64xf32>,
    %276 = arith.index_cast %272 : i32 to index
    %c0_87 = arith.constant 0 : index
    %277 = vector.load %arg16[%276, %c0_87] : memref<10x64xf32, #tpu.memory_space<vmem>>, vector<1x64xf32>
    %c0_88 = arith.constant 0 : index
    %c64 = arith.constant 64 : index
    %278 = vector.load %arg17[%c0_88, %c64] : memref<3x128xf32, #tpu.memory_space<vmem>>, vector<1x64xf32>
    tpu.vector_store %arg17[%c0_88, %c64], %277 {strides = array<i32>} : memref<3x128xf32, #tpu.memory_space<vmem>>, vector<1x64xf32>,
    %c1_89 = arith.constant 1 : index
    %c0_90 = arith.constant 0 : index
    %279 = memref.load %arg1[%c1_89, %c0_90] : memref<3x2xi32, #tpu.memory_space<smem>>
    %c1_91 = arith.constant 1 : index
    %c1_92 = arith.constant 1 : index
    %280 = memref.load %arg1[%c1_91, %c1_92] : memref<3x2xi32, #tpu.memory_space<smem>>
    %281 = arith.index_cast %279 : i32 to index
    %c0_93 = arith.constant 0 : index
    %282 = vector.load %arg16[%281, %c0_93] : memref<10x64xf32, #tpu.memory_space<vmem>>, vector<1x64xf32>
    %c1_94 = arith.constant 1 : index
    %c0_95 = arith.constant 0 : index
    %283 = vector.load %arg17[%c1_94, %c0_95] : memref<3x128xf32, #tpu.memory_space<vmem>>, vector<1x64xf32>
    tpu.vector_store %arg17[%c1_94, %c0_95], %282 {strides = array<i32>} : memref<3x128xf32, #tpu.memory_space<vmem>>, vector<1x64xf32>,
    %284 = arith.index_cast %280 : i32 to index
    %c0_96 = arith.constant 0 : index
    %285 = vector.load %arg16[%284, %c0_96] : memref<10x64xf32, #tpu.memory_space<vmem>>, vector<1x64xf32>
    %c1_97 = arith.constant 1 : index
    %c64_98 = arith.constant 64 : index
    %286 = vector.load %arg17[%c1_97, %c64_98] : memref<3x128xf32, #tpu.memory_space<vmem>>, vector<1x64xf32>
    tpu.vector_store %arg17[%c1_97, %c64_98], %285 {strides = array<i32>} : memref<3x128xf32, #tpu.memory_space<vmem>>, vector<1x64xf32>,
    %c2_99 = arith.constant 2 : index
    %c0_100 = arith.constant 0 : index
    %287 = memref.load %arg1[%c2_99, %c0_100] : memref<3x2xi32, #tpu.memory_space<smem>>
    %c2_101 = arith.constant 2 : index
    %c1_102 = arith.constant 1 : index
    %288 = memref.load %arg1[%c2_101, %c1_102] : memref<3x2xi32, #tpu.memory_space<smem>>
    %289 = arith.index_cast %287 : i32 to index
    %c0_103 = arith.constant 0 : index
    %290 = vector.load %arg16[%289, %c0_103] : memref<10x64xf32, #tpu.memory_space<vmem>>, vector<1x64xf32>
    %c2_104 = arith.constant 2 : index
    %c0_105 = arith.constant 0 : index
    %291 = vector.load %arg17[%c2_104, %c0_105] : memref<3x128xf32, #tpu.memory_space<vmem>>, vector<1x64xf32>
    tpu.vector_store %arg17[%c2_104, %c0_105], %290 {strides = array<i32>} : memref<3x128xf32, #tpu.memory_space<vmem>>, vector<1x64xf32>,
    %292 = arith.index_cast %288 : i32 to index
    %c0_106 = arith.constant 0 : index
    %293 = vector.load %arg16[%292, %c0_106] : memref<10x64xf32, #tpu.memory_space<vmem>>, vector<1x64xf32>
    %c2_107 = arith.constant 2 : index
    %c64_108 = arith.constant 64 : index
    %294 = vector.load %arg17[%c2_107, %c64_108] : memref<3x128xf32, #tpu.memory_space<vmem>>, vector<1x64xf32>
    tpu.vector_store %arg17[%c2_107, %c64_108], %293 {strides = array<i32>} : memref<3x128xf32, #tpu.memory_space<vmem>>, vector<1x64xf32>,
    %c0_109 = arith.constant 0 : index
    %c0_110 = arith.constant 0 : index
    %295 = vector.load %arg17[%c0_109, %c0_110] : memref<3x128xf32, #tpu.memory_space<vmem>>, vector<3x128xf32>
    %c0_111 = arith.constant 0 : index
    %c0_112 = arith.constant 0 : index
    %296 = vector.load %arg10[%c0_111, %c0_112] : memref<128x32xf32, #tpu.memory_space<vmem>>, vector<128x32xf32>
    %cst_113 = arith.constant dense<0.000000e+00> : vector<3x32xf32>
    %297 = tpu.matmul %295, %296, %cst_113 {dimension_numbers = #tpu.dot_dimension_numbers<[1], [0], [0], [1], [0, 0, 1, 1], [], []>} : vector<3x128xf32>, vector<128x32xf32>, vector<3x32xf32> -> vector<3x32xf32>
    %c0_114 = arith.constant 0 : index
    %c0_115 = arith.constant 0 : index
    %298 = vector.load %arg11[%c0_114, %c0_115] : memref<1x32xf32, #tpu.memory_space<vmem>>, vector<1x32xf32>
    %299 = vector.broadcast %298 : vector<1x32xf32> to vector<3x32xf32>
    %300 = arith.addf %297, %299 : vector<3x32xf32>
    %cst_116 = arith.constant 0.000000e+00 : f32
    %301 = vector.broadcast %cst_116 : f32 to vector<3x32xf32>
    %302 = arith.maximumf %300, %301 : vector<3x32xf32>
    %c0_117 = arith.constant 0 : index
    %c0_118 = arith.constant 0 : index
    %303 = vector.load %arg12[%c0_117, %c0_118] : memref<32x128xf32, #tpu.memory_space<vmem>>, vector<32x128xf32>
    %cst_119 = arith.constant dense<0.000000e+00> : vector<3x128xf32>
    %304 = tpu.matmul %302, %303, %cst_119 {dimension_numbers = #tpu.dot_dimension_numbers<[1], [0], [0], [1], [0, 0, 1, 1], [], []>} : vector<3x32xf32>, vector<32x128xf32>, vector<3x128xf32> -> vector<3x128xf32>
    %c0_120 = arith.constant 0 : index
    %c0_121 = arith.constant 0 : index
    %305 = vector.load %arg13[%c0_120, %c0_121] : memref<1x128xf32, #tpu.memory_space<vmem>>, vector<1x128xf32>
    %306 = vector.broadcast %305 : vector<1x128xf32> to vector<3x128xf32>
    %307 = arith.addf %304, %306 : vector<3x128xf32>
    %cst_122 = arith.constant dense<0xFF800000> : vector<3xf32>
    %308 = vector.multi_reduction <maximumf>, %307, %cst_122 [1] : vector<3x128xf32> to vector<3xf32>
    %309 = vector.shape_cast %308 : vector<3xf32> to vector<3x1xf32>
    %310 = vector.broadcast %309 : vector<3x1xf32> to vector<3x128xf32>
    %311 = arith.subf %307, %310 : vector<3x128xf32>
    %312 = math.exp %311 : vector<3x128xf32>
    %cst_123 = arith.constant dense<0.000000e+00> : vector<3xf32>
    %313 = vector.multi_reduction <add>, %312, %cst_123 [1] : vector<3x128xf32> to vector<3xf32>
    %314 = vector.shape_cast %313 : vector<3xf32> to vector<3x1xf32>
    %315 = math.log %314 : vector<3x1xf32>
    %316 = vector.broadcast %315 : vector<3x1xf32> to vector<3x128xf32>
    %317 = arith.subf %311, %316 : vector<3x128xf32>
    %c0_124 = arith.constant 0 : index
    %c0_125 = arith.constant 0 : index
    %318 = vector.load %arg15[%c0_124, %c0_125] : memref<3x128xf32, #tpu.memory_space<vmem>>, vector<3x128xf32>
    tpu.vector_store %arg15[%c0_124, %c0_125], %317 {strides = array<i32>} : memref<3x128xf32, #tpu.memory_space<vmem>>, vector<3x128xf32>,
    return
  }
  func.func @transform_0(%arg0: i32, %arg1: memref<3x2xi32, #tpu.memory_space<smem>>) -> (i32, i32) {
    %c0_i32 = arith.constant 0 : i32
    %c0_i32_0 = arith.constant 0 : i32
    %c0_i32_1 = arith.constant 0 : i32
    return %c0_i32, %c0_i32_0 : i32, i32
  }
  func.func @transform_1(%arg0: i32, %arg1: memref<3x2xi32, #tpu.memory_space<smem>>) -> (i32, i32) {
    %c0_i32 = arith.constant 0 : i32
    %c0_i32_0 = arith.constant 0 : i32
    %c0_i32_1 = arith.constant 0 : i32
    return %c0_i32, %c0_i32_0 : i32, i32
  }
  func.func @transform_2(%arg0: i32, %arg1: memref<3x2xi32, #tpu.memory_space<smem>>) -> (i32, i32) {
    %c0_i32 = arith.constant 0 : i32
    %c0_i32_0 = arith.constant 0 : i32
    %c0_i32_1 = arith.constant 0 : i32
    return %c0_i32, %c0_i32_0 : i32, i32
  }
  func.func @transform_3(%arg0: i32, %arg1: memref<3x2xi32, #tpu.memory_space<smem>>) -> (i32, i32) {
    %c0_i32 = arith.constant 0 : i32
    %c0_i32_0 = arith.constant 0 : i32
    %c0_i32_1 = arith.constant 0 : i32
    return %c0_i32, %c0_i32_0 : i32, i32
  }
  func.func @transform_4(%arg0: i32, %arg1: memref<3x2xi32, #tpu.memory_space<smem>>) -> (i32, i32) {
    %c0_i32 = arith.constant 0 : i32
    %c0_i32_0 = arith.constant 0 : i32
    %c0_i32_1 = arith.constant 0 : i32
    return %c0_i32, %c0_i32_0 : i32, i32
  }
  func.func @transform_5(%arg0: i32, %arg1: memref<3x2xi32, #tpu.memory_space<smem>>) -> (i32, i32) {
    %c0_i32 = arith.constant 0 : i32
    %c0_i32_0 = arith.constant 0 : i32
    %c0_i32_1 = arith.constant 0 : i32
    return %c0_i32, %c0_i32_0 : i32, i32
  }
  func.func @transform_6(%arg0: i32, %arg1: memref<3x2xi32, #tpu.memory_space<smem>>) -> (i32, i32) {
    %c0_i32 = arith.constant 0 : i32
    %c0_i32_0 = arith.constant 0 : i32
    %c0_i32_1 = arith.constant 0 : i32
    return %c0_i32, %c0_i32_0 : i32, i32
  }
  func.func @transform_7(%arg0: i32, %arg1: memref<3x2xi32, #tpu.memory_space<smem>>) -> (i32, i32) {
    %c0_i32 = arith.constant 0 : i32
    %c0_i32_0 = arith.constant 0 : i32
    %c0_i32_1 = arith.constant 0 : i32
    return %c0_i32, %c0_i32_0 : i32, i32
  }
  func.func @transform_8(%arg0: i32, %arg1: memref<3x2xi32, #tpu.memory_space<smem>>) -> (i32, i32) {
    %c0_i32 = arith.constant 0 : i32
    %c0_i32_0 = arith.constant 0 : i32
    %c0_i32_1 = arith.constant 0 : i32
    return %c0_i32, %c0_i32_0 : i32, i32
  }
  func.func @transform_9(%arg0: i32, %arg1: memref<3x2xi32, #tpu.memory_space<smem>>) -> (i32, i32) {
    %c0_i32 = arith.constant 0 : i32
    %c0_i32_0 = arith.constant 0 : i32
    %c0_i32_1 = arith.constant 0 : i32
    return %c0_i32, %c0_i32_0 : i32, i32
  }
  func.func @transform_10(%arg0: i32, %arg1: memref<3x2xi32, #tpu.memory_space<smem>>) -> (i32, i32) {
    %c0_i32 = arith.constant 0 : i32
    %c0_i32_0 = arith.constant 0 : i32
    %c0_i32_1 = arith.constant 0 : i32
    return %c0_i32, %c0_i32_0 : i32, i32
  }
  func.func @transform_11(%arg0: i32, %arg1: memref<3x2xi32, #tpu.memory_space<smem>>) -> (i32, i32) {
    %c0_i32 = arith.constant 0 : i32
    %c0_i32_0 = arith.constant 0 : i32
    %c0_i32_1 = arith.constant 0 : i32
    return %c0_i32, %c0_i32_0 : i32, i32
  }
  func.func @transform_12(%arg0: i32, %arg1: memref<3x2xi32, #tpu.memory_space<smem>>) -> (i32, i32) {
    %c0_i32 = arith.constant 0 : i32
    %c0_i32_0 = arith.constant 0 : i32
    %c0_i32_1 = arith.constant 0 : i32
    return %c0_i32, %c0_i32_0 : i32, i32
  }
  func.func @transform_13(%arg0: i32, %arg1: memref<3x2xi32, #tpu.memory_space<smem>>) -> (i32, i32) {
    %c0_i32 = arith.constant 0 : i32
    %c0_i32_0 = arith.constant 0 : i32
    %c0_i32_1 = arith.constant 0 : i32
    return %c0_i32, %c0_i32_0 : i32, i32
  }
}

</mosaic_0001>

<llo_original>
// kernel: tpu_custom_call.1
$region0: #{tpu_custom_call.1}
  #allocation0 [shape = 'u32[]', space=smem, size = 0x4, offset = 0x4, fixed_abs, tag = 'smem constant byte address 0x4 - core index']
  #allocation1 [shape = 'u32[144,128]{1,0:T(1,128)}', space=vmem, size = 0x12000, scoped, tag = 'internal scratch']
  #allocation2 [shape = 'f32[10,64]{1,0:T(8,128)}', space=vmem, size = 0x2000, scoped, tag = 'scratch operand']
  #allocation3 [shape = 'f32[3,128]{1,0:T(4,128)}', space=vmem, size = 0x800, scoped, tag = 'scratch operand']
  #allocation4 [shape = 's32[1]{0}', space=sflag, size = 0x4, scoped, tag = 'scoped memory for tpu_custom_call.1']
  #allocation5 [shape = 'u8[2048]{0}', space=smem, size = 0x800, scoped, tag = 'prefetched SMEM operand 0']
  %s0 = inlined_call_operand.vmem [shape: s32[3,2], index: 0, kind: input, shape index: {}]
  %s1 = inlined_call_operand.hbm [shape: f32[10,48], index: 1, kind: input, shape index: {}]
  %s2 = inlined_call_operand.vmem [shape: f32[48,256], index: 2, kind: input, shape index: {}]
  %s3 = inlined_call_operand.vmem [shape: f32[64,256], index: 3, kind: input, shape index: {}]
  %s4 = inlined_call_operand.hbm [shape: f32[1,256], index: 4, kind: input, shape index: {}]
  %s5 = inlined_call_operand.vmem [shape: f32[64,16], index: 5, kind: input, shape index: {}]
  %s6 = inlined_call_operand.hbm [shape: f32[1,16], index: 6, kind: input, shape index: {}]
  %s7 = inlined_call_operand.vmem [shape: f32[16,128], index: 7, kind: input, shape index: {}]
  %s8 = inlined_call_operand.vmem [shape: f32[1,128], index: 8, kind: input, shape index: {}]
  %s9 = inlined_call_operand.vmem [shape: f32[128,32], index: 9, kind: input, shape index: {}]
  %s10 = inlined_call_operand.vmem [shape: f32[1,32], index: 10, kind: input, shape index: {}]
  %s11 = inlined_call_operand.hbm [shape: f32[32,128], index: 11, kind: input, shape index: {}]
  %s12 = inlined_call_operand.vmem [shape: f32[1,128], index: 12, kind: input, shape index: {}]
  %s13 = inlined_call_operand.hbm [shape: f32[10,128], index: 13, kind: output, shape index: {0}]
  %s14 = inlined_call_operand.hbm [shape: f32[3,128], index: 14, kind: output, shape index: {1}]
  %15 = xla_tuple %s13, %s14
  %s16 = sld [smem:[#allocation0]]
  $region82: #{tpu_custom_call.1} parent=0
    _
  %s18 = ssub.s32 1, %s16
  %s19 = scalar_select 0, %s18, %s16
  %s20 = sshll.u32 %s0, 4
  %s21 = int_to_ptr.vmem [resolvable:$true] %s20
  %23 = dma.vmem_to_smem %s21, 64, [#allocation5], [#allocation4]
  %24 = dma.done [#allocation4], 64
  %25 = sfence
  $region1: #{tpu_custom_call.1} parent=0
    #allocation6 [shape = 'u8[8192]{0}', space=vmem, size = 0x2000, scoped, tag = 'input window, operand 1, single buffered']
    #allocation7 [shape = 's32[1]{0}', space=sflag, size = 0x4, scoped, tag = 'scoped memory for tpu_custom_call.1']
    #allocation8 [shape = 's32[1]{0}', space=sflag, size = 0x4, scoped, tag = 'scoped memory for tpu_custom_call.1']
    #allocation9 [shape = 'u8[1024]{0}', space=vmem, size = 0x400, scoped, tag = 'input window, operand 4, single buffered']
    #allocation10 [shape = 's32[1]{0}', space=sflag, size = 0x4, scoped, tag = 'scoped memory for tpu_custom_call.1']
    #allocation11 [shape = 'u8[512]{0}', space=vmem, size = 0x400, scoped, tag = 'input window, operand 6, single buffered']
    #allocation12 [shape = 'u8[16384]{0}', space=vmem, size = 0x4000, scoped, tag = 'input window, operand 11, single buffered']
    #allocation13 [shape = 's32[1]{0}', space=sflag, size = 0x4, scoped, tag = 'scoped memory for tpu_custom_call.1']
    #allocation14 [shape = 'u8[8192]{0}', space=vmem, size = 0x2000, scoped, tag = 'output window, operand 0, single buffered']
    #allocation15 [shape = 'u8[2048]{0}', space=vmem, size = 0x800, scoped, tag = 'output window, operand 1, single buffered']
    #allocation16 [shape = 's32[1]{0}', space=sflag, size = 0x4, scoped, tag = 'scoped memory for tpu_custom_call.1']
    %26 = vsyncpa [#allocation7], 0
    %27 = vsyncpa [#allocation10], 0
    %28 = vsyncpa [#allocation13], 0
    %29 = vsyncpa [#allocation8], 0
    %30 = vsyncpa [#allocation16], 0
    // Predicated region
    $region2: #{tpu_custom_call.1} parent=1 // pred_check
      _
    $region3: #{tpu_custom_call.1} parent=1 // pred_check_branch
      %32 = sbr.rel (0) target = $region5
    $region4: #{tpu_custom_call.1} parent=1 // pred_region
      %s34 = ssub.s32 256, 256
      %35 = vsyncadd [#allocation7], %s34
      %s36 = sshll.u32 [#allocation6], 4
      %s37 = int_to_ptr.vmem [resolvable:$true] %s36
      %42 = dma.hbm_to_vmem [thread:$0]  %s1, 256, %s37, [#allocation7], 128, 128, 8
    $region5: #{tpu_custom_call.1} parent=1 // pred_fallthru
      _
    // Predicated region
    $region6: #{tpu_custom_call.1} parent=1 // pred_check
      _
    $region7: #{tpu_custom_call.1} parent=1 // pred_check_branch
      %44 = sbr.rel (0) target = $region9
    $region8: #{tpu_custom_call.1} parent=1 // pred_region
      _
    $region9: #{tpu_custom_call.1} parent=1 // pred_fallthru
      _
    // Predicated region
    $region10: #{tpu_custom_call.1} parent=1 // pred_check
      _
    $region11: #{tpu_custom_call.1} parent=1 // pred_check_branch
      %46 = sbr.rel (0) target = $region13
    $region12: #{tpu_custom_call.1} parent=1 // pred_region
      _
    $region13: #{tpu_custom_call.1} parent=1 // pred_fallthru
      _
    // Predicated region
    $region14: #{tpu_custom_call.1} parent=1 // pred_check
      _
    $region15: #{tpu_custom_call.1} parent=1 // pred_check_branch
      %48 = sbr.rel (0) target = $region17
    $region16: #{tpu_custom_call.1} parent=1 // pred_region
      %s50 = ssub.s32 32, 32
      %51 = vsyncadd [#allocation10], %s50
      %s53 = sshll.u32 [#allocation9], 4
      %s54 = int_to_ptr.vmem [resolvable:$true] %s53
      %56 = dma.hbm_to_vmem [thread:$0]  %s4, 32, %s54, [#allocation10]
    $region17: #{tpu_custom_call.1} parent=1 // pred_fallthru
      _
    // Predicated region
    $region18: #{tpu_custom_call.1} parent=1 // pred_check
      _
    $region19: #{tpu_custom_call.1} parent=1 // pred_check_branch
      %58 = sbr.rel (0) target = $region21
    $region20: #{tpu_custom_call.1} parent=1 // pred_region
      _
    $region21: #{tpu_custom_call.1} parent=1 // pred_fallthru
      _
    // Predicated region
    $region22: #{tpu_custom_call.1} parent=1 // pred_check
      _
    $region23: #{tpu_custom_call.1} parent=1 // pred_check_branch
      %60 = sbr.rel (0) target = $region25
    $region24: #{tpu_custom_call.1} parent=1 // pred_region
      %s62 = ssub.s32 16, 16
      %63 = vsyncadd [#allocation10], %s62
      %s65 = sshll.u32 [#allocation11], 4
      %s66 = int_to_ptr.vmem [resolvable:$true] %s65
      %68 = dma.hbm_to_vmem [thread:$0]  %s6, 16, %s66, [#allocation10]
    $region25: #{tpu_custom_call.1} parent=1 // pred_fallthru
      _
    // Predicated region
    $region26: #{tpu_custom_call.1} parent=1 // pred_check
      _
    $region27: #{tpu_custom_call.1} parent=1 // pred_check_branch
      %70 = sbr.rel (0) target = $region29
    $region28: #{tpu_custom_call.1} parent=1 // pred_region
      _
    $region29: #{tpu_custom_call.1} parent=1 // pred_fallthru
      _
    // Predicated region
    $region30: #{tpu_custom_call.1} parent=1 // pred_check
      _
    $region31: #{tpu_custom_call.1} parent=1 // pred_check_branch
      %72 = sbr.rel (0) target = $region33
    $region32: #{tpu_custom_call.1} parent=1 // pred_region
      _
    $region33: #{tpu_custom_call.1} parent=1 // pred_fallthru
      _
    // Predicated region
    $region34: #{tpu_custom_call.1} parent=1 // pred_check
      _
    $region35: #{tpu_custom_call.1} parent=1 // pred_check_branch
      %74 = sbr.rel (0) target = $region37
    $region36: #{tpu_custom_call.1} parent=1 // pred_region
      _
    $region37: #{tpu_custom_call.1} parent=1 // pred_fallthru
      _
    // Predicated region
    $region38: #{tpu_custom_call.1} parent=1 // pred_check
      _
    $region39: #{tpu_custom_call.1} parent=1 // pred_check_branch
      %76 = sbr.rel (0) target = $region41
    $region40: #{tpu_custom_call.1} parent=1 // pred_region
      _
    $region41: #{tpu_custom_call.1} parent=1 // pred_fallthru
      _
    // Predicated region
    $region42: #{tpu_custom_call.1} parent=1 // pred_check
      _
    $region43: #{tpu_custom_call.1} parent=1 // pred_check_branch
      %78 = sbr.rel (0) target = $region45
    $region44: #{tpu_custom_call.1} parent=1 // pred_region
      %s80 = ssub.s32 512, 512
      %81 = vsyncadd [#allocation13], %s80
      %s82 = sshll.u32 [#allocation12], 4
      %s83 = int_to_ptr.vmem [resolvable:$true] %s82
      %88 = dma.hbm_to_vmem [thread:$0]  %s11, 512, %s83, [#allocation13], 128, 128, 8
    $region45: #{tpu_custom_call.1} parent=1 // pred_fallthru
      _
    // Predicated region
    $region46: #{tpu_custom_call.1} parent=1 // pred_check
      _
    $region47: #{tpu_custom_call.1} parent=1 // pred_check_branch
      %90 = sbr.rel (0) target = $region49
    $region48: #{tpu_custom_call.1} parent=1 // pred_region
      _
    $region49: #{tpu_custom_call.1} parent=1 // pred_fallthru
      _
    // Predicated region
    $region50: #{tpu_custom_call.1} parent=1 // pred_check
      _
    $region51: #{tpu_custom_call.1} parent=1 // pred_check_branch
      %92 = sbr.rel (0) target = $region53
    $region52: #{tpu_custom_call.1} parent=1 // pred_region
      %93 = dma.done [#allocation7], 256
    $region53: #{tpu_custom_call.1} parent=1 // pred_fallthru
      _
    // Predicated region
    $region54: #{tpu_custom_call.1} parent=1 // pred_check
      _
    $region55: #{tpu_custom_call.1} parent=1 // pred_check_branch
      %95 = sbr.rel (0) target = $region57
    $region56: #{tpu_custom_call.1} parent=1 // pred_region
      %96 = dma.done [#allocation10], 32
    $region57: #{tpu_custom_call.1} parent=1 // pred_fallthru
      _
    // Predicated region
    $region58: #{tpu_custom_call.1} parent=1 // pred_check
      _
    $region59: #{tpu_custom_call.1} parent=1 // pred_check_branch
      %98 = sbr.rel (0) target = $region61
    $region60: #{tpu_custom_call.1} parent=1 // pred_region
      %99 = dma.done [#allocation10], 16
    $region61: #{tpu_custom_call.1} parent=1 // pred_fallthru
      _
    // Predicated region
    $region62: #{tpu_custom_call.1} parent=1 // pred_check
      _
    $region63: #{tpu_custom_call.1} parent=1 // pred_check_branch
      %101 = sbr.rel (0) target = $region65
    $region64: #{tpu_custom_call.1} parent=1 // pred_region
      %102 = dma.done [#allocation13], 512
    $region65: #{tpu_custom_call.1} parent=1 // pred_fallthru
      _
    %v103 = vld [vmem:[#allocation6] sm:$0xff]
    %v104 = vld [vmem:[#allocation6 + $0x8] sm:$0x3]
    %v105 = vld [vmem:[%s2] sm:$0xff]
    %v106 = vld [vmem:[%s2 + $0x8] sm:$0xff]
    %v107 = vld [vmem:[%s2 + $0x10] sm:$0xff]
    %v108 = vld [vmem:[%s2 + $0x18] sm:$0xff]
    %v109 = vld [vmem:[%s2 + $0x20] sm:$0xff]
    %v110 = vld [vmem:[%s2 + $0x28] sm:$0xff]
    %v111 = vld [vmem:[%s2 + $0x30] sm:$0xff]
    %v112 = vld [vmem:[%s2 + $0x38] sm:$0xff]
    %v113 = vld [vmem:[%s2 + $0x40] sm:$0xff]
    %v114 = vld [vmem:[%s2 + $0x48] sm:$0xff]
    %v115 = vld [vmem:[%s2 + $0x50] sm:$0xff]
    %v116 = vld [vmem:[%s2 + $0x58] sm:$0xff]
    %v117 = vld [vmem:[#allocation9] sm:$0x3]
    %v119 = vlaneseq
    %v120 = vshrl.u32 %v119, 7
    %v121 = vsub.s32 0, %v120
    %v122 = vrot.slane %v117, %v121
    %v123 = vlaneseq
    %v124 = vshrl.u32 %v123, 7
    %v125 = vsub.s32 1, %v124
    %v126 = vrot.slane %v117, %v125
    %vm129 = vcmask 392192
    %v131 = vsel %vm129, %v103, 0
    %v134 = vsel %vm129, %v104, 0
    %136 = vmatprep.subr.mxu0 %v106
    %137 = vmatpush1.msra.mxu0 %v105
    %138 = vmatprep.subr.mxu0 %v108
    %139 = vmatpush1.msra.mxu0 %v107
    %140 = vmatprep.subr.mxu0 %v110
    %141 = vmatpush1.msra.mxu0 %v109
    %142 = vmatprep.subr.mxu0 %v112
    %143 = vmatpush1.msra.mxu0 %v111
    %144 = vmatprep.subr.mxu0 %v114
    %145 = vmatpush1.msra.mxu0 %v113
    %146 = vmatprep.subr.mxu0 %v116
    %147 = vmatpush1.msra.mxu0 %v115
    %148 = vmatprep.subr.mxu0 0.0
    %149 = vmatpush1.msra.mxu0 0.0
    %150 = vmatprep.subr.mxu0 0.0
    %151 = vmatpush1.msra.mxu0 0.0
    %152 = vmatprep.subr.mxu0 0.0
    %153 = vmatpush1.msra.mxu0 0.0
    %154 = vmatprep.subr.mxu0 0.0
    %155 = vmatpush1.msra.mxu0 0.0
    %156 = vmatprep.subr.mxu0 0.0
    %157 = vmatpush1.msra.mxu0 0.0
    %158 = vmatprep.subr.mxu0 0.0
    %159 = vmatpush1.msra.mxu0 0.0
    %160 = vmatprep.subr.mxu0 0.0
    %161 = vmatpush1.msra.mxu0 0.0
    %162 = vmatprep.subr.mxu0 0.0
    %163 = vmatpush1.msra.mxu0 0.0
    %164 = vmatprep.subr.mxu0 0.0
    %165 = vmatpush1.msra.mxu0 0.0
    %166 = vmatprep.subr.mxu0 0.0
    %167 = vmatpush1.msra.mxu0 0.0
    %168 = vmatprep.subr.mxu0 0.0
    %169 = vmatpush1.msra.mxu0 0.0
    %170 = vmatprep.subr.mxu0 0.0
    %171 = vmatpush1.msra.mxu0 0.0
    %172 = vmatprep.subr.mxu0 0.0
    %173 = vmatpush1.msra.mxu0 0.0
    %174 = vmatprep.subr.mxu0 0.0
    %175 = vmatpush1.msra.mxu0 0.0
    %176 = vmatprep.subr.mxu0 0.0
    %177 = vmatpush1.msra.mxu0 0.0
    %178 = vmatprep.subr.mxu0 0.0
    %179 = vmatpush1.msra.mxu0 0.0
    %180 = vmatprep.subr.mxu0 0.0
    %181 = vmatpush1.msra.mxu0 0.0
    %182 = vmatprep.subr.mxu0 0.0
    %183 = vmatpush1.msra.mxu0 0.0
    %184 = vmatprep.subr.mxu0 0.0
    %185 = vmatpush1.msra.mxu0 0.0
    %186 = vmatprep.subr.mxu0 0.0
    %187 = vmatpush1.msra.mxu0 0.0
    %188 = vmatprep.subr.mxu0 0.0
    %189 = vmatpush1.msra.mxu0 0.0
    %190 = vmatprep.subr.mxu0 0.0
    %191 = vmatpush1.msra.mxu0 0.0
    %192 = vmatprep.subr.mxu0 0.0
    %193 = vmatpush1.msra.mxu0 0.0
    %194 = vmatprep.subr.mxu0 0.0
    %195 = vmatpush1.msra.mxu0 0.0
    %196 = vmatprep.subr.mxu0 0.0
    %197 = vmatpush1.msra.mxu0 0.0
    %198 = vmatprep.subr.mxu0 0.0
    %199 = vmatpush1.msra.mxu0 0.0
    %200 = vmatprep.mubr.f32.mxu0 0.0
    %201 = vmatmul.mubr.f32.gmra.mrb[0].mxu0 %v131
    %v202 = vpop.f32.mrb[0].mxu0
    %v203 = vadd.f32 %v122, %v202
    %v204 = vpop.f32.mrb[0].mxu0
    %v205 = vadd.f32 %v126, %v204
    %206 = vmatprep.mubr.f32.mxu0 0.0
    %207 = vmatmul.mubr.f32.gmra.mrb[0].mxu0 %v134
    %v208 = vpop.f32.mrb[0].mxu0
    %v209 = vadd.f32 %v122, %v208
    %v210 = vpop.f32.mrb[0].mxu0
    %v211 = vadd.f32 %v126, %v210
    %212 = vdwg.mxu0
    %v213 = vld [vmem:[%s3] sm:$0xff]
    %v214 = vld [vmem:[%s3 + $0x8] sm:$0xff]
    %v215 = vld [vmem:[%s3 + $0x10] sm:$0xff]
    %v216 = vld [vmem:[%s3 + $0x18] sm:$0xff]
    %v217 = vld [vmem:[%s3 + $0x20] sm:$0xff]
    %v218 = vld [vmem:[%s3 + $0x28] sm:$0xff]
    %v219 = vld [vmem:[%s3 + $0x30] sm:$0xff]
    %v220 = vld [vmem:[%s3 + $0x38] sm:$0xff]
    %v221 = vld [vmem:[%s3 + $0x40] sm:$0xff]
    %v222 = vld [vmem:[%s3 + $0x48] sm:$0xff]
    %v223 = vld [vmem:[%s3 + $0x50] sm:$0xff]
    %v224 = vld [vmem:[%s3 + $0x58] sm:$0xff]
    %v225 = vld [vmem:[%s3 + $0x60] sm:$0xff]
    %v226 = vld [vmem:[%s3 + $0x68] sm:$0xff]
    %v227 = vld [vmem:[%s3 + $0x70] sm:$0xff]
    %v228 = vld [vmem:[%s3 + $0x78] sm:$0xff]
    %v229 = vlaneseq
    %v230 = vand.u32 %v229, 127
    %v231 = vadd.s32 %v230, 128
    %vm232 = vcmp.ge.s32.totalorder %v230, 128
    %vm233 = vcmp.ge.s32.totalorder %v231, 128
    %vm234 = vcmp.lt.s32.totalorder %v230, 192
    %vm235 = vcmp.lt.s32.totalorder %v231, 192
    %vm236 = vmand %vm232, %vm234
    %vm237 = vmand %vm233, %vm235
    %vm238 = vcmask 523264
    %v240 = vsel %vm238, 0.0, 0
    %242 = vmatprep.subr.mxu0 %v214
    %243 = vmatpush1.msra.mxu0 %v213
    %244 = vmatprep.subr.mxu0 %v216
    %245 = vmatpush1.msra.mxu0 %v215
    %246 = vmatprep.subr.mxu0 %v218
    %247 = vmatpush1.msra.mxu0 %v217
    %248 = vmatprep.subr.mxu0 %v220
    %249 = vmatpush1.msra.mxu0 %v219
    %250 = vmatprep.subr.mxu0 %v222
    %251 = vmatpush1.msra.mxu0 %v221
    %252 = vmatprep.subr.mxu0 %v224
    %253 = vmatpush1.msra.mxu0 %v223
    %254 = vmatprep.subr.mxu0 %v226
    %255 = vmatpush1.msra.mxu0 %v225
    %256 = vmatprep.subr.mxu0 %v228
    %257 = vmatpush1.msra.mxu0 %v227
    %258 = vmatprep.subr.mxu0 0.0
    %259 = vmatpush1.msra.mxu0 0.0
    %260 = vmatprep.subr.mxu0 0.0
    %261 = vmatpush1.msra.mxu0 0.0
    %262 = vmatprep.subr.mxu0 0.0
    %263 = vmatpush1.msra.mxu0 0.0
    %264 = vmatprep.subr.mxu0 0.0
    %265 = vmatpush1.msra.mxu0 0.0
    %266 = vmatprep.subr.mxu0 0.0
    %267 = vmatpush1.msra.mxu0 0.0
    %268 = vmatprep.subr.mxu0 0.0
    %269 = vmatpush1.msra.mxu0 0.0
    %270 = vmatprep.subr.mxu0 0.0
    %271 = vmatpush1.msra.mxu0 0.0
    %272 = vmatprep.subr.mxu0 0.0
    %273 = vmatpush1.msra.mxu0 0.0
    %274 = vmatprep.subr.mxu0 0.0
    %275 = vmatpush1.msra.mxu0 0.0
    %276 = vmatprep.subr.mxu0 0.0
    %277 = vmatpush1.msra.mxu0 0.0
    %278 = vmatprep.subr.mxu0 0.0
    %279 = vmatpush1.msra.mxu0 0.0
    %280 = vmatprep.subr.mxu0 0.0
    %281 = vmatpush1.msra.mxu0 0.0
    %282 = vmatprep.subr.mxu0 0.0
    %283 = vmatpush1.msra.mxu0 0.0
    %284 = vmatprep.subr.mxu0 0.0
    %285 = vmatpush1.msra.mxu0 0.0
    %286 = vmatprep.subr.mxu0 0.0
    %287 = vmatpush1.msra.mxu0 0.0
    %288 = vmatprep.subr.mxu0 0.0
    %289 = vmatpush1.msra.mxu0 0.0
    %290 = vmatprep.subr.mxu0 0.0
    %291 = vmatpush1.msra.mxu0 0.0
    %292 = vmatprep.subr.mxu0 0.0
    %293 = vmatpush1.msra.mxu0 0.0
    %294 = vmatprep.subr.mxu0 0.0
    %295 = vmatpush1.msra.mxu0 0.0
    %296 = vmatprep.subr.mxu0 0.0
    %297 = vmatpush1.msra.mxu0 0.0
    %298 = vmatprep.subr.mxu0 0.0
    %299 = vmatpush1.msra.mxu0 0.0
    %300 = vmatprep.subr.mxu0 0.0
    %301 = vmatpush1.msra.mxu0 0.0
    %302 = vmatprep.subr.mxu0 0.0
    %303 = vmatpush1.msra.mxu0 0.0
    %304 = vmatprep.subr.mxu0 0.0
    %305 = vmatpush1.msra.mxu0 0.0
    %306 = vmatprep.mubr.f32.mxu0 0.0
    %307 = vmatmul.mubr.f32.gmra.mrb[0].mxu0 %v240
    %v308 = vpop.f32.mrb[0].mxu0
    %v309 = vadd.f32 0.0, %v308
    %v310 = vpop.f32.mrb[0].mxu0
    %v311 = vadd.f32 0.0, %v310
    %312 = vdwg.mxu0
    %v313 = vadd.f32 %v203, %v309
    %v314 = vadd.f32 %v205, %v311
    %v315 = vmul.f32 %v313, 0.5
    %v316 = vmul.f32 %v314, 0.5
    %v317 = vsel %vm236, %v313, %v315
    %v318 = vsel %vm237, %v314, %v316
    %v319 = vtanh.pop %v317
    %v320 = vtanh.pop %v318
    %v321 = vmul.f32 %v319, 0.5
    %v322 = vmul.f32 %v320, 0.5
    %v323 = vadd.f32 %v321, 0.5
    %v324 = vadd.f32 %v322, 0.5
    %v325 = vsel %vm236, %v319, %v323
    %v326 = vsel %vm237, %v320, %v324
    %v327 = vmul.f32 %v325, 0.0
    %v328 = vmul.f32 %v325, %v326
    %330 = vrot.lane.b32.xlu0 %v328, 64
    %v331 = vpop.permute.xlu0 %330
    %v333 = vadd.f32 %v327, %v331
    %v334 = vtanh.pop %v333
    %v335 = vmul.f32 %v326, %v334
    %337 = vrot.lane.b32.xlu0 %v335, 64
    %v338 = vpop.permute.xlu0 %337
    %vm340 = vcmask 516096
    %341 = vst.msk [vmem:[#allocation2] sm:$0x1] %vm340, %v338
    %v342 = vsel %vm238, %v338, 0
    %344 = vmatprep.subr.mxu0 %v214
    %345 = vmatpush1.msra.mxu0 %v213
    %346 = vmatprep.subr.mxu0 %v216
    %347 = vmatpush1.msra.mxu0 %v215
    %348 = vmatprep.subr.mxu0 %v218
    %349 = vmatpush1.msra.mxu0 %v217
    %350 = vmatprep.subr.mxu0 %v220
    %351 = vmatpush1.msra.mxu0 %v219
    %352 = vmatprep.subr.mxu0 %v222
    %353 = vmatpush1.msra.mxu0 %v221
    %354 = vmatprep.subr.mxu0 %v224
    %355 = vmatpush1.msra.mxu0 %v223
    %356 = vmatprep.subr.mxu0 %v226
    %357 = vmatpush1.msra.mxu0 %v225
    %358 = vmatprep.subr.mxu0 %v228
    %359 = vmatpush1.msra.mxu0 %v227
    %360 = vmatprep.subr.mxu0 0.0
    %361 = vmatpush1.msra.mxu0 0.0
    %362 = vmatprep.subr.mxu0 0.0
    %363 = vmatpush1.msra.mxu0 0.0
    %364 = vmatprep.subr.mxu0 0.0
    %365 = vmatpush1.msra.mxu0 0.0
    %366 = vmatprep.subr.mxu0 0.0
    %367 = vmatpush1.msra.mxu0 0.0
    %368 = vmatprep.subr.mxu0 0.0
    %369 = vmatpush1.msra.mxu0 0.0
    %370 = vmatprep.subr.mxu0 0.0
    %371 = vmatpush1.msra.mxu0 0.0
    %372 = vmatprep.subr.mxu0 0.0
    %373 = vmatpush1.msra.mxu0 0.0
    %374 = vmatprep.subr.mxu0 0.0
    %375 = vmatpush1.msra.mxu0 0.0
    %376 = vmatprep.subr.mxu0 0.0
    %377 = vmatpush1.msra.mxu0 0.0
    %378 = vmatprep.subr.mxu0 0.0
    %379 = vmatpush1.msra.mxu0 0.0
    %380 = vmatprep.subr.mxu0 0.0
    %381 = vmatpush1.msra.mxu0 0.0
    %382 = vmatprep.subr.mxu0 0.0
    %383 = vmatpush1.msra.mxu0 0.0
    %384 = vmatprep.subr.mxu0 0.0
    %385 = vmatpush1.msra.mxu0 0.0
    %386 = vmatprep.subr.mxu0 0.0
    %387 = vmatpush1.msra.mxu0 0.0
    %388 = vmatprep.subr.mxu0 0.0
    %389 = vmatpush1.msra.mxu0 0.0
    %390 = vmatprep.subr.mxu0 0.0
    %391 = vmatpush1.msra.mxu0 0.0
    %392 = vmatprep.subr.mxu0 0.0
    %393 = vmatpush1.msra.mxu0 0.0
    %394 = vmatprep.subr.mxu0 0.0
    %395 = vmatpush1.msra.mxu0 0.0
    %396 = vmatprep.subr.mxu0 0.0
    %397 = vmatpush1.msra.mxu0 0.0
    %398 = vmatprep.subr.mxu0 0.0
    %399 = vmatpush1.msra.mxu0 0.0
    %400 = vmatprep.subr.mxu0 0.0
    %401 = vmatpush1.msra.mxu0 0.0
    %402 = vmatprep.subr.mxu0 0.0
    %403 = vmatpush1.msra.mxu0 0.0
    %404 = vmatprep.subr.mxu0 0.0
    %405 = vmatpush1.msra.mxu0 0.0
    %406 = vmatprep.subr.mxu0 0.0
    %407 = vmatpush1.msra.mxu0 0.0
    %408 = vmatprep.mubr.f32.mxu0 0.0
    %409 = vmatmul.mubr.f32.gmra.mrb[0].mxu0 %v342
    %v410 = vpop.f32.mrb[0].mxu0
    %v411 = vadd.f32 0.0, %v410
    %v412 = vpop.f32.mrb[0].mxu0
    %v413 = vadd.f32 0.0, %v412
    %414 = vdwg.mxu0
    %v417 = vrot.slane %v411, 7
    %v418 = vrot.slane %v413, 7
    %v421 = vadd.f32 %v203, %v417
    %v422 = vadd.f32 %v205, %v418
    %v423 = vmul.f32 %v421, 0.5
    %v424 = vmul.f32 %v422, 0.5
    %v425 = vsel %vm236, %v421, %v423
    %v426 = vsel %vm237, %v422, %v424
    %v427 = vtanh.pop %v425
    %v428 = vtanh.pop %v426
    %v429 = vmul.f32 %v427, 0.5
    %v430 = vmul.f32 %v428, 0.5
    %v431 = vadd.f32 %v429, 0.5
    %v432 = vadd.f32 %v430, 0.5
    %v433 = vsel %vm236, %v427, %v431
    %v434 = vsel %vm237, %v428, %v432
    %v436 = vrot.slane %v333, 7
    %v438 = vmul.f32 %v433, %v436
    %v439 = vmul.f32 %v433, %v434
    %441 = vrot.lane.b32.xlu0 %v439, 64
    %v442 = vpop.permute.xlu0 %441
    %v444 = vadd.f32 %v438, %v442
    %v445 = vtanh.pop %v444
    %v446 = vmul.f32 %v434, %v445
    %448 = vrot.lane.b32.xlu0 %v446, 64
    %v449 = vpop.permute.xlu0 %448
    %vm451 = vcmask 517121
    %452 = vst.msk [vmem:[#allocation2] sm:$0x2] %vm451, %v449
    %v453 = vrot.slane %v446, 1
    %454 = vrot.lane.b32.xlu0 %v453, 64
    %v455 = vpop.permute.xlu0 %454
    %v456 = vsel %vm238, %v455, 0
    %458 = vmatprep.subr.mxu0 %v214
    %459 = vmatpush1.msra.mxu0 %v213
    %460 = vmatprep.subr.mxu0 %v216
    %461 = vmatpush1.msra.mxu0 %v215
    %462 = vmatprep.subr.mxu0 %v218
    %463 = vmatpush1.msra.mxu0 %v217
    %464 = vmatprep.subr.mxu0 %v220
    %465 = vmatpush1.msra.mxu0 %v219
    %466 = vmatprep.subr.mxu0 %v222
    %467 = vmatpush1.msra.mxu0 %v221
    %468 = vmatprep.subr.mxu0 %v224
    %469 = vmatpush1.msra.mxu0 %v223
    %470 = vmatprep.subr.mxu0 %v226
    %471 = vmatpush1.msra.mxu0 %v225
    %472 = vmatprep.subr.mxu0 %v228
    %473 = vmatpush1.msra.mxu0 %v227
    %474 = vmatprep.subr.mxu0 0.0
    %475 = vmatpush1.msra.mxu0 0.0
    %476 = vmatprep.subr.mxu0 0.0
    %477 = vmatpush1.msra.mxu0 0.0
    %478 = vmatprep.subr.mxu0 0.0
    %479 = vmatpush1.msra.mxu0 0.0
    %480 = vmatprep.subr.mxu0 0.0
    %481 = vmatpush1.msra.mxu0 0.0
    %482 = vmatprep.subr.mxu0 0.0
    %483 = vmatpush1.msra.mxu0 0.0
    %484 = vmatprep.subr.mxu0 0.0
    %485 = vmatpush1.msra.mxu0 0.0
    %486 = vmatprep.subr.mxu0 0.0
    %487 = vmatpush1.msra.mxu0 0.0
    %488 = vmatprep.subr.mxu0 0.0
    %489 = vmatpush1.msra.mxu0 0.0
    %490 = vmatprep.subr.mxu0 0.0
    %491 = vmatpush1.msra.mxu0 0.0
    %492 = vmatprep.subr.mxu0 0.0
    %493 = vmatpush1.msra.mxu0 0.0
    %494 = vmatprep.subr.mxu0 0.0
    %495 = vmatpush1.msra.mxu0 0.0
    %496 = vmatprep.subr.mxu0 0.0
    %497 = vmatpush1.msra.mxu0 0.0
    %498 = vmatprep.subr.mxu0 0.0
    %499 = vmatpush1.msra.mxu0 0.0
    %500 = vmatprep.subr.mxu0 0.0
    %501 = vmatpush1.msra.mxu0 0.0
    %502 = vmatprep.subr.mxu0 0.0
    %503 = vmatpush1.msra.mxu0 0.0
    %504 = vmatprep.subr.mxu0 0.0
    %505 = vmatpush1.msra.mxu0 0.0
    %506 = vmatprep.subr.mxu0 0.0
    %507 = vmatpush1.msra.mxu0 0.0
    %508 = vmatprep.subr.mxu0 0.0
    %509 = vmatpush1.msra.mxu0 0.0
    %510 = vmatprep.subr.mxu0 0.0
    %511 = vmatpush1.msra.mxu0 0.0
    %512 = vmatprep.subr.mxu0 0.0
    %513 = vmatpush1.msra.mxu0 0.0
    %514 = vmatprep.subr.mxu0 0.0
    %515 = vmatpush1.msra.mxu0 0.0
    %516 = vmatprep.subr.mxu0 0.0
    %517 = vmatpush1.msra.mxu0 0.0
    %518 = vmatprep.subr.mxu0 0.0
    %519 = vmatpush1.msra.mxu0 0.0
    %520 = vmatprep.subr.mxu0 0.0
    %521 = vmatpush1.msra.mxu0 0.0
    %522 = vmatprep.mubr.f32.mxu0 0.0
    %523 = vmatmul.mubr.f32.gmra.mrb[0].mxu0 %v456
    %v524 = vpop.f32.mrb[0].mxu0
    %v525 = vadd.f32 0.0, %v524
    %v526 = vpop.f32.mrb[0].mxu0
    %v527 = vadd.f32 0.0, %v526
    %528 = vdwg.mxu0
    %v531 = vrot.slane %v525, 6
    %v532 = vrot.slane %v527, 6
    %v535 = vadd.f32 %v203, %v531
    %v536 = vadd.f32 %v205, %v532
    %v537 = vmul.f32 %v535, 0.5
    %v538 = vmul.f32 %v536, 0.5
    %v539 = vsel %vm236, %v535, %v537
    %v540 = vsel %vm237, %v536, %v538
    %v541 = vtanh.pop %v539
    %v542 = vtanh.pop %v540
    %v543 = vmul.f32 %v541, 0.5
    %v544 = vmul.f32 %v542, 0.5
    %v545 = vadd.f32 %v543, 0.5
    %v546 = vadd.f32 %v544, 0.5
    %v547 = vsel %vm236, %v541, %v545
    %v548 = vsel %vm237, %v542, %v546
    %v550 = vrot.slane %v444, 7
    %v552 = vmul.f32 %v547, %v550
    %v553 = vmul.f32 %v547, %v548
    %555 = vrot.lane.b32.xlu0 %v553, 64
    %v556 = vpop.permute.xlu0 %555
    %v558 = vadd.f32 %v552, %v556
    %v559 = vtanh.pop %v558
    %v560 = vmul.f32 %v548, %v559
    %562 = vrot.lane.b32.xlu0 %v560, 64
    %v563 = vpop.permute.xlu0 %562
    %vm565 = vcmask 518146
    %566 = vst.msk [vmem:[#allocation2] sm:$0x4] %vm565, %v563
    %v567 = vrot.slane %v560, 2
    %568 = vrot.lane.b32.xlu0 %v567, 64
    %v569 = vpop.permute.xlu0 %568
    %v570 = vsel %vm238, %v569, 0
    %572 = vmatprep.subr.mxu0 %v214
    %573 = vmatpush1.msra.mxu0 %v213
    %574 = vmatprep.subr.mxu0 %v216
    %575 = vmatpush1.msra.mxu0 %v215
    %576 = vmatprep.subr.mxu0 %v218
    %577 = vmatpush1.msra.mxu0 %v217
    %578 = vmatprep.subr.mxu0 %v220
    %579 = vmatpush1.msra.mxu0 %v219
    %580 = vmatprep.subr.mxu0 %v222
    %581 = vmatpush1.msra.mxu0 %v221
    %582 = vmatprep.subr.mxu0 %v224
    %583 = vmatpush1.msra.mxu0 %v223
    %584 = vmatprep.subr.mxu0 %v226
    %585 = vmatpush1.msra.mxu0 %v225
    %586 = vmatprep.subr.mxu0 %v228
    %587 = vmatpush1.msra.mxu0 %v227
    %588 = vmatprep.subr.mxu0 0.0
    %589 = vmatpush1.msra.mxu0 0.0
    %590 = vmatprep.subr.mxu0 0.0
    %591 = vmatpush1.msra.mxu0 0.0
    %592 = vmatprep.subr.mxu0 0.0
    %593 = vmatpush1.msra.mxu0 0.0
    %594 = vmatprep.subr.mxu0 0.0
    %595 = vmatpush1.msra.mxu0 0.0
    %596 = vmatprep.subr.mxu0 0.0
    %597 = vmatpush1.msra.mxu0 0.0
    %598 = vmatprep.subr.mxu0 0.0
    %599 = vmatpush1.msra.mxu0 0.0
    %600 = vmatprep.subr.mxu0 0.0
    %601 = vmatpush1.msra.mxu0 0.0
    %602 = vmatprep.subr.mxu0 0.0
    %603 = vmatpush1.msra.mxu0 0.0
    %604 = vmatprep.subr.mxu0 0.0
    %605 = vmatpush1.msra.mxu0 0.0
    %606 = vmatprep.subr.mxu0 0.0
    %607 = vmatpush1.msra.mxu0 0.0
    %608 = vmatprep.subr.mxu0 0.0
    %609 = vmatpush1.msra.mxu0 0.0
    %610 = vmatprep.subr.mxu0 0.0
    %611 = vmatpush1.msra.mxu0 0.0
    %612 = vmatprep.subr.mxu0 0.0
    %613 = vmatpush1.msra.mxu0 0.0
    %614 = vmatprep.subr.mxu0 0.0
    %615 = vmatpush1.msra.mxu0 0.0
    %616 = vmatprep.subr.mxu0 0.0
    %617 = vmatpush1.msra.mxu0 0.0
    %618 = vmatprep.subr.mxu0 0.0
    %619 = vmatpush1.msra.mxu0 0.0
    %620 = vmatprep.subr.mxu0 0.0
    %621 = vmatpush1.msra.mxu0 0.0
    %622 = vmatprep.subr.mxu0 0.0
    %623 = vmatpush1.msra.mxu0 0.0
    %624 = vmatprep.subr.mxu0 0.0
    %625 = vmatpush1.msra.mxu0 0.0
    %626 = vmatprep.subr.mxu0 0.0
    %627 = vmatpush1.msra.mxu0 0.0
    %628 = vmatprep.subr.mxu0 0.0
    %629 = vmatpush1.msra.mxu0 0.0
    %630 = vmatprep.subr.mxu0 0.0
    %631 = vmatpush1.msra.mxu0 0.0
    %632 = vmatprep.subr.mxu0 0.0
    %633 = vmatpush1.msra.mxu0 0.0
    %634 = vmatprep.subr.mxu0 0.0
    %635 = vmatpush1.msra.mxu0 0.0
    %636 = vmatprep.mubr.f32.mxu0 0.0
    %637 = vmatmul.mubr.f32.gmra.mrb[0].mxu0 %v570
    %v638 = vpop.f32.mrb[0].mxu0
    %v639 = vadd.f32 0.0, %v638
    %v640 = vpop.f32.mrb[0].mxu0
    %v641 = vadd.f32 0.0, %v640
    %642 = vdwg.mxu0
    %v645 = vrot.slane %v639, 5
    %v646 = vrot.slane %v641, 5
    %v649 = vadd.f32 %v203, %v645
    %v650 = vadd.f32 %v205, %v646
    %v651 = vmul.f32 %v649, 0.5
    %v652 = vmul.f32 %v650, 0.5
    %v653 = vsel %vm236, %v649, %v651
    %v654 = vsel %vm237, %v650, %v652
    %v655 = vtanh.pop %v653
    %v656 = vtanh.pop %v654
    %v657 = vmul.f32 %v655, 0.5
    %v658 = vmul.f32 %v656, 0.5
    %v659 = vadd.f32 %v657, 0.5
    %v660 = vadd.f32 %v658, 0.5
    %v661 = vsel %vm236, %v655, %v659
    %v662 = vsel %vm237, %v656, %v660
    %v664 = vrot.slane %v558, 7
    %v666 = vmul.f32 %v661, %v664
    %v667 = vmul.f32 %v661, %v662
    %669 = vrot.lane.b32.xlu0 %v667, 64
    %v670 = vpop.permute.xlu0 %669
    %v672 = vadd.f32 %v666, %v670
    %v673 = vtanh.pop %v672
    %v674 = vmul.f32 %v662, %v673
    %676 = vrot.lane.b32.xlu0 %v674, 64
    %v677 = vpop.permute.xlu0 %676
    %vm679 = vcmask 519171
    %680 = vst.msk [vmem:[#allocation2] sm:$0x8] %vm679, %v677
    %v681 = vrot.slane %v674, 3
    %682 = vrot.lane.b32.xlu0 %v681, 64
    %v683 = vpop.permute.xlu0 %682
    %v684 = vsel %vm238, %v683, 0
    %686 = vmatprep.subr.mxu0 %v214
    %687 = vmatpush1.msra.mxu0 %v213
    %688 = vmatprep.subr.mxu0 %v216
    %689 = vmatpush1.msra.mxu0 %v215
    %690 = vmatprep.subr.mxu0 %v218
    %691 = vmatpush1.msra.mxu0 %v217
    %692 = vmatprep.subr.mxu0 %v220
    %693 = vmatpush1.msra.mxu0 %v219
    %694 = vmatprep.subr.mxu0 %v222
    %695 = vmatpush1.msra.mxu0 %v221
    %696 = vmatprep.subr.mxu0 %v224
    %697 = vmatpush1.msra.mxu0 %v223
    %698 = vmatprep.subr.mxu0 %v226
    %699 = vmatpush1.msra.mxu0 %v225
    %700 = vmatprep.subr.mxu0 %v228
    %701 = vmatpush1.msra.mxu0 %v227
    %702 = vmatprep.subr.mxu0 0.0
    %703 = vmatpush1.msra.mxu0 0.0
    %704 = vmatprep.subr.mxu0 0.0
    %705 = vmatpush1.msra.mxu0 0.0
    %706 = vmatprep.subr.mxu0 0.0
    %707 = vmatpush1.msra.mxu0 0.0
    %708 = vmatprep.subr.mxu0 0.0
    %709 = vmatpush1.msra.mxu0 0.0
    %710 = vmatprep.subr.mxu0 0.0
    %711 = vmatpush1.msra.mxu0 0.0
    %712 = vmatprep.subr.mxu0 0.0
    %713 = vmatpush1.msra.mxu0 0.0
    %714 = vmatprep.subr.mxu0 0.0
    %715 = vmatpush1.msra.mxu0 0.0
    %716 = vmatprep.subr.mxu0 0.0
    %717 = vmatpush1.msra.mxu0 0.0
    %718 = vmatprep.subr.mxu0 0.0
    %719 = vmatpush1.msra.mxu0 0.0
    %720 = vmatprep.subr.mxu0 0.0
    %721 = vmatpush1.msra.mxu0 0.0
    %722 = vmatprep.subr.mxu0 0.0
    %723 = vmatpush1.msra.mxu0 0.0
    %724 = vmatprep.subr.mxu0 0.0
    %725 = vmatpush1.msra.mxu0 0.0
    %726 = vmatprep.subr.mxu0 0.0
    %727 = vmatpush1.msra.mxu0 0.0
    %728 = vmatprep.subr.mxu0 0.0
    %729 = vmatpush1.msra.mxu0 0.0
    %730 = vmatprep.subr.mxu0 0.0
    %731 = vmatpush1.msra.mxu0 0.0
    %732 = vmatprep.subr.mxu0 0.0
    %733 = vmatpush1.msra.mxu0 0.0
    %734 = vmatprep.subr.mxu0 0.0
    %735 = vmatpush1.msra.mxu0 0.0
    %736 = vmatprep.subr.mxu0 0.0
    %737 = vmatpush1.msra.mxu0 0.0
    %738 = vmatprep.subr.mxu0 0.0
    %739 = vmatpush1.msra.mxu0 0.0
    %740 = vmatprep.subr.mxu0 0.0
    %741 = vmatpush1.msra.mxu0 0.0
    %742 = vmatprep.subr.mxu0 0.0
    %743 = vmatpush1.msra.mxu0 0.0
    %744 = vmatprep.subr.mxu0 0.0
    %745 = vmatpush1.msra.mxu0 0.0
    %746 = vmatprep.subr.mxu0 0.0
    %747 = vmatpush1.msra.mxu0 0.0
    %748 = vmatprep.subr.mxu0 0.0
    %749 = vmatpush1.msra.mxu0 0.0
    %750 = vmatprep.mubr.f32.mxu0 0.0
    %751 = vmatmul.mubr.f32.gmra.mrb[0].mxu0 %v684
    %v752 = vpop.f32.mrb[0].mxu0
    %v753 = vadd.f32 0.0, %v752
    %v754 = vpop.f32.mrb[0].mxu0
    %v755 = vadd.f32 0.0, %v754
    %756 = vdwg.mxu0
    %v759 = vrot.slane %v753, 4
    %v760 = vrot.slane %v755, 4
    %v763 = vadd.f32 %v203, %v759
    %v764 = vadd.f32 %v205, %v760
    %v765 = vmul.f32 %v763, 0.5
    %v766 = vmul.f32 %v764, 0.5
    %v767 = vsel %vm236, %v763, %v765
    %v768 = vsel %vm237, %v764, %v766
    %v769 = vtanh.pop %v767
    %v770 = vtanh.pop %v768
    %v771 = vmul.f32 %v769, 0.5
    %v772 = vmul.f32 %v770, 0.5
    %v773 = vadd.f32 %v771, 0.5
    %v774 = vadd.f32 %v772, 0.5
    %v775 = vsel %vm236, %v769, %v773
    %v776 = vsel %vm237, %v770, %v774
    %v778 = vrot.slane %v672, 7
    %v780 = vmul.f32 %v775, %v778
    %v781 = vmul.f32 %v775, %v776
    %783 = vrot.lane.b32.xlu0 %v781, 64
    %v784 = vpop.permute.xlu0 %783
    %v786 = vadd.f32 %v780, %v784
    %v787 = vtanh.pop %v786
    %v788 = vmul.f32 %v776, %v787
    %790 = vrot.lane.b32.xlu0 %v788, 64
    %v791 = vpop.permute.xlu0 %790
    %vm793 = vcmask 520196
    %794 = vst.msk [vmem:[#allocation2] sm:$0x10] %vm793, %v791
    %v795 = vrot.slane %v788, 4
    %796 = vrot.lane.b32.xlu0 %v795, 64
    %v797 = vpop.permute.xlu0 %796
    %v798 = vsel %vm238, %v797, 0
    %800 = vmatprep.subr.mxu0 %v214
    %801 = vmatpush1.msra.mxu0 %v213
    %802 = vmatprep.subr.mxu0 %v216
    %803 = vmatpush1.msra.mxu0 %v215
    %804 = vmatprep.subr.mxu0 %v218
    %805 = vmatpush1.msra.mxu0 %v217
    %806 = vmatprep.subr.mxu0 %v220
    %807 = vmatpush1.msra.mxu0 %v219
    %808 = vmatprep.subr.mxu0 %v222
    %809 = vmatpush1.msra.mxu0 %v221
    %810 = vmatprep.subr.mxu0 %v224
    %811 = vmatpush1.msra.mxu0 %v223
    %812 = vmatprep.subr.mxu0 %v226
    %813 = vmatpush1.msra.mxu0 %v225
    %814 = vmatprep.subr.mxu0 %v228
    %815 = vmatpush1.msra.mxu0 %v227
    %816 = vmatprep.subr.mxu0 0.0
    %817 = vmatpush1.msra.mxu0 0.0
    %818 = vmatprep.subr.mxu0 0.0
    %819 = vmatpush1.msra.mxu0 0.0
    %820 = vmatprep.subr.mxu0 0.0
    %821 = vmatpush1.msra.mxu0 0.0
    %822 = vmatprep.subr.mxu0 0.0
    %823 = vmatpush1.msra.mxu0 0.0
    %824 = vmatprep.subr.mxu0 0.0
    %825 = vmatpush1.msra.mxu0 0.0
    %826 = vmatprep.subr.mxu0 0.0
    %827 = vmatpush1.msra.mxu0 0.0
    %828 = vmatprep.subr.mxu0 0.0
    %829 = vmatpush1.msra.mxu0 0.0
    %830 = vmatprep.subr.mxu0 0.0
    %831 = vmatpush1.msra.mxu0 0.0
    %832 = vmatprep.subr.mxu0 0.0
    %833 = vmatpush1.msra.mxu0 0.0
    %834 = vmatprep.subr.mxu0 0.0
    %835 = vmatpush1.msra.mxu0 0.0
    %836 = vmatprep.subr.mxu0 0.0
    %837 = vmatpush1.msra.mxu0 0.0
    %838 = vmatprep.subr.mxu0 0.0
    %839 = vmatpush1.msra.mxu0 0.0
    %840 = vmatprep.subr.mxu0 0.0
    %841 = vmatpush1.msra.mxu0 0.0
    %842 = vmatprep.subr.mxu0 0.0
    %843 = vmatpush1.msra.mxu0 0.0
    %844 = vmatprep.subr.mxu0 0.0
    %845 = vmatpush1.msra.mxu0 0.0
    %846 = vmatprep.subr.mxu0 0.0
    %847 = vmatpush1.msra.mxu0 0.0
    %848 = vmatprep.subr.mxu0 0.0
    %849 = vmatpush1.msra.mxu0 0.0
    %850 = vmatprep.subr.mxu0 0.0
    %851 = vmatpush1.msra.mxu0 0.0
    %852 = vmatprep.subr.mxu0 0.0
    %853 = vmatpush1.msra.mxu0 0.0
    %854 = vmatprep.subr.mxu0 0.0
    %855 = vmatpush1.msra.mxu0 0.0
    %856 = vmatprep.subr.mxu0 0.0
    %857 = vmatpush1.msra.mxu0 0.0
    %858 = vmatprep.subr.mxu0 0.0
    %859 = vmatpush1.msra.mxu0 0.0
    %860 = vmatprep.subr.mxu0 0.0
    %861 = vmatpush1.msra.mxu0 0.0
    %862 = vmatprep.subr.mxu0 0.0
    %863 = vmatpush1.msra.mxu0 0.0
    %864 = vmatprep.mubr.f32.mxu0 0.0
    %865 = vmatmul.mubr.f32.gmra.mrb[0].mxu0 %v798
    %v866 = vpop.f32.mrb[0].mxu0
    %v867 = vadd.f32 0.0, %v866
    %v868 = vpop.f32.mrb[0].mxu0
    %v869 = vadd.f32 0.0, %v868
    %870 = vdwg.mxu0
    %v873 = vrot.slane %v867, 3
    %v874 = vrot.slane %v869, 3
    %v877 = vadd.f32 %v203, %v873
    %v878 = vadd.f32 %v205, %v874
    %v879 = vmul.f32 %v877, 0.5
    %v880 = vmul.f32 %v878, 0.5
    %v881 = vsel %vm236, %v877, %v879
    %v882 = vsel %vm237, %v878, %v880
    %v883 = vtanh.pop %v881
    %v884 = vtanh.pop %v882
    %v885 = vmul.f32 %v883, 0.5
    %v886 = vmul.f32 %v884, 0.5
    %v887 = vadd.f32 %v885, 0.5
    %v888 = vadd.f32 %v886, 0.5
    %v889 = vsel %vm236, %v883, %v887
    %v890 = vsel %vm237, %v884, %v888
    %v892 = vrot.slane %v786, 7
    %v894 = vmul.f32 %v889, %v892
    %v895 = vmul.f32 %v889, %v890
    %897 = vrot.lane.b32.xlu0 %v895, 64
    %v898 = vpop.permute.xlu0 %897
    %v900 = vadd.f32 %v894, %v898
    %v901 = vtanh.pop %v900
    %v902 = vmul.f32 %v890, %v901
    %904 = vrot.lane.b32.xlu0 %v902, 64
    %v905 = vpop.permute.xlu0 %904
    %vm907 = vcmask 521221
    %908 = vst.msk [vmem:[#allocation2] sm:$0x20] %vm907, %v905
    %v909 = vrot.slane %v902, 5
    %910 = vrot.lane.b32.xlu0 %v909, 64
    %v911 = vpop.permute.xlu0 %910
    %v912 = vsel %vm238, %v911, 0
    %914 = vmatprep.subr.mxu0 %v214
    %915 = vmatpush1.msra.mxu0 %v213
    %916 = vmatprep.subr.mxu0 %v216
    %917 = vmatpush1.msra.mxu0 %v215
    %918 = vmatprep.subr.mxu0 %v218
    %919 = vmatpush1.msra.mxu0 %v217
    %920 = vmatprep.subr.mxu0 %v220
    %921 = vmatpush1.msra.mxu0 %v219
    %922 = vmatprep.subr.mxu0 %v222
    %923 = vmatpush1.msra.mxu0 %v221
    %924 = vmatprep.subr.mxu0 %v224
    %925 = vmatpush1.msra.mxu0 %v223
    %926 = vmatprep.subr.mxu0 %v226
    %927 = vmatpush1.msra.mxu0 %v225
    %928 = vmatprep.subr.mxu0 %v228
    %929 = vmatpush1.msra.mxu0 %v227
    %930 = vmatprep.subr.mxu0 0.0
    %931 = vmatpush1.msra.mxu0 0.0
    %932 = vmatprep.subr.mxu0 0.0
    %933 = vmatpush1.msra.mxu0 0.0
    %934 = vmatprep.subr.mxu0 0.0
    %935 = vmatpush1.msra.mxu0 0.0
    %936 = vmatprep.subr.mxu0 0.0
    %937 = vmatpush1.msra.mxu0 0.0
    %938 = vmatprep.subr.mxu0 0.0
    %939 = vmatpush1.msra.mxu0 0.0
    %940 = vmatprep.subr.mxu0 0.0
    %941 = vmatpush1.msra.mxu0 0.0
    %942 = vmatprep.subr.mxu0 0.0
    %943 = vmatpush1.msra.mxu0 0.0
    %944 = vmatprep.subr.mxu0 0.0
    %945 = vmatpush1.msra.mxu0 0.0
    %946 = vmatprep.subr.mxu0 0.0
    %947 = vmatpush1.msra.mxu0 0.0
    %948 = vmatprep.subr.mxu0 0.0
    %949 = vmatpush1.msra.mxu0 0.0
    %950 = vmatprep.subr.mxu0 0.0
    %951 = vmatpush1.msra.mxu0 0.0
    %952 = vmatprep.subr.mxu0 0.0
    %953 = vmatpush1.msra.mxu0 0.0
    %954 = vmatprep.subr.mxu0 0.0
    %955 = vmatpush1.msra.mxu0 0.0
    %956 = vmatprep.subr.mxu0 0.0
    %957 = vmatpush1.msra.mxu0 0.0
    %958 = vmatprep.subr.mxu0 0.0
    %959 = vmatpush1.msra.mxu0 0.0
    %960 = vmatprep.subr.mxu0 0.0
    %961 = vmatpush1.msra.mxu0 0.0
    %962 = vmatprep.subr.mxu0 0.0
    %963 = vmatpush1.msra.mxu0 0.0
    %964 = vmatprep.subr.mxu0 0.0
    %965 = vmatpush1.msra.mxu0 0.0
    %966 = vmatprep.subr.mxu0 0.0
    %967 = vmatpush1.msra.mxu0 0.0
    %968 = vmatprep.subr.mxu0 0.0
    %969 = vmatpush1.msra.mxu0 0.0
    %970 = vmatprep.subr.mxu0 0.0
    %971 = vmatpush1.msra.mxu0 0.0
    %972 = vmatprep.subr.mxu0 0.0
    %973 = vmatpush1.msra.mxu0 0.0
    %974 = vmatprep.subr.mxu0 0.0
    %975 = vmatpush1.msra.mxu0 0.0
    %976 = vmatprep.subr.mxu0 0.0
    %977 = vmatpush1.msra.mxu0 0.0
    %978 = vmatprep.mubr.f32.mxu0 0.0
    %979 = vmatmul.mubr.f32.gmra.mrb[0].mxu0 %v912
    %v980 = vpop.f32.mrb[0].mxu0
    %v981 = vadd.f32 0.0, %v980
    %v982 = vpop.f32.mrb[0].mxu0
    %v983 = vadd.f32 0.0, %v982
    %984 = vdwg.mxu0
    %v987 = vrot.slane %v981, 2
    %v988 = vrot.slane %v983, 2
    %v991 = vadd.f32 %v203, %v987
    %v992 = vadd.f32 %v205, %v988
    %v993 = vmul.f32 %v991, 0.5
    %v994 = vmul.f32 %v992, 0.5
    %v995 = vsel %vm236, %v991, %v993
    %v996 = vsel %vm237, %v992, %v994
    %v997 = vtanh.pop %v995
    %v998 = vtanh.pop %v996
    %v999 = vmul.f32 %v997, 0.5
    %v1000 = vmul.f32 %v998, 0.5
    %v1001 = vadd.f32 %v999, 0.5
    %v1002 = vadd.f32 %v1000, 0.5
    %v1003 = vsel %vm236, %v997, %v1001
    %v1004 = vsel %vm237, %v998, %v1002
    %v1006 = vrot.slane %v900, 7
    %v1008 = vmul.f32 %v1003, %v1006
    %v1009 = vmul.f32 %v1003, %v1004
    %1011 = vrot.lane.b32.xlu0 %v1009, 64
    %v1012 = vpop.permute.xlu0 %1011
    %v1014 = vadd.f32 %v1008, %v1012
    %v1015 = vtanh.pop %v1014
    %v1016 = vmul.f32 %v1004, %v1015
    %1018 = vrot.lane.b32.xlu0 %v1016, 64
    %v1019 = vpop.permute.xlu0 %1018
    %vm1021 = vcmask 522246
    %1022 = vst.msk [vmem:[#allocation2] sm:$0x40] %vm1021, %v1019
    %v1023 = vrot.slane %v1016, 6
    %1024 = vrot.lane.b32.xlu0 %v1023, 64
    %v1025 = vpop.permute.xlu0 %1024
    %v1026 = vsel %vm238, %v1025, 0
    %1028 = vmatprep.subr.mxu0 %v214
    %1029 = vmatpush1.msra.mxu0 %v213
    %1030 = vmatprep.subr.mxu0 %v216
    %1031 = vmatpush1.msra.mxu0 %v215
    %1032 = vmatprep.subr.mxu0 %v218
    %1033 = vmatpush1.msra.mxu0 %v217
    %1034 = vmatprep.subr.mxu0 %v220
    %1035 = vmatpush1.msra.mxu0 %v219
    %1036 = vmatprep.subr.mxu0 %v222
    %1037 = vmatpush1.msra.mxu0 %v221
    %1038 = vmatprep.subr.mxu0 %v224
    %1039 = vmatpush1.msra.mxu0 %v223
    %1040 = vmatprep.subr.mxu0 %v226
    %1041 = vmatpush1.msra.mxu0 %v225
    %1042 = vmatprep.subr.mxu0 %v228
    %1043 = vmatpush1.msra.mxu0 %v227
    %1044 = vmatprep.subr.mxu0 0.0
    %1045 = vmatpush1.msra.mxu0 0.0
    %1046 = vmatprep.subr.mxu0 0.0
    %1047 = vmatpush1.msra.mxu0 0.0
    %1048 = vmatprep.subr.mxu0 0.0
    %1049 = vmatpush1.msra.mxu0 0.0
    %1050 = vmatprep.subr.mxu0 0.0
    %1051 = vmatpush1.msra.mxu0 0.0
    %1052 = vmatprep.subr.mxu0 0.0
    %1053 = vmatpush1.msra.mxu0 0.0
    %1054 = vmatprep.subr.mxu0 0.0
    %1055 = vmatpush1.msra.mxu0 0.0
    %1056 = vmatprep.subr.mxu0 0.0
    %1057 = vmatpush1.msra.mxu0 0.0
    %1058 = vmatprep.subr.mxu0 0.0
    %1059 = vmatpush1.msra.mxu0 0.0
    %1060 = vmatprep.subr.mxu0 0.0
    %1061 = vmatpush1.msra.mxu0 0.0
    %1062 = vmatprep.subr.mxu0 0.0
    %1063 = vmatpush1.msra.mxu0 0.0
    %1064 = vmatprep.subr.mxu0 0.0
    %1065 = vmatpush1.msra.mxu0 0.0
    %1066 = vmatprep.subr.mxu0 0.0
    %1067 = vmatpush1.msra.mxu0 0.0
    %1068 = vmatprep.subr.mxu0 0.0
    %1069 = vmatpush1.msra.mxu0 0.0
    %1070 = vmatprep.subr.mxu0 0.0
    %1071 = vmatpush1.msra.mxu0 0.0
    %1072 = vmatprep.subr.mxu0 0.0
    %1073 = vmatpush1.msra.mxu0 0.0
    %1074 = vmatprep.subr.mxu0 0.0
    %1075 = vmatpush1.msra.mxu0 0.0
    %1076 = vmatprep.subr.mxu0 0.0
    %1077 = vmatpush1.msra.mxu0 0.0
    %1078 = vmatprep.subr.mxu0 0.0
    %1079 = vmatpush1.msra.mxu0 0.0
    %1080 = vmatprep.subr.mxu0 0.0
    %1081 = vmatpush1.msra.mxu0 0.0
    %1082 = vmatprep.subr.mxu0 0.0
    %1083 = vmatpush1.msra.mxu0 0.0
    %1084 = vmatprep.subr.mxu0 0.0
    %1085 = vmatpush1.msra.mxu0 0.0
    %1086 = vmatprep.subr.mxu0 0.0
    %1087 = vmatpush1.msra.mxu0 0.0
    %1088 = vmatprep.subr.mxu0 0.0
    %1089 = vmatpush1.msra.mxu0 0.0
    %1090 = vmatprep.subr.mxu0 0.0
    %1091 = vmatpush1.msra.mxu0 0.0
    %1092 = vmatprep.mubr.f32.mxu0 0.0
    %1093 = vmatmul.mubr.f32.gmra.mrb[0].mxu0 %v1026
    %v1094 = vpop.f32.mrb[0].mxu0
    %v1095 = vadd.f32 0.0, %v1094
    %v1096 = vpop.f32.mrb[0].mxu0
    %v1097 = vadd.f32 0.0, %v1096
    %1098 = vdwg.mxu0
    %v1101 = vrot.slane %v1095, 1
    %v1102 = vrot.slane %v1097, 1
    %v1105 = vadd.f32 %v203, %v1101
    %v1106 = vadd.f32 %v205, %v1102
    %v1107 = vmul.f32 %v1105, 0.5
    %v1108 = vmul.f32 %v1106, 0.5
    %v1109 = vsel %vm236, %v1105, %v1107
    %v1110 = vsel %vm237, %v1106, %v1108
    %v1111 = vtanh.pop %v1109
    %v1112 = vtanh.pop %v1110
    %v1113 = vmul.f32 %v1111, 0.5
    %v1114 = vmul.f32 %v1112, 0.5
    %v1115 = vadd.f32 %v1113, 0.5
    %v1116 = vadd.f32 %v1114, 0.5
    %v1117 = vsel %vm236, %v1111, %v1115
    %v1118 = vsel %vm237, %v1112, %v1116
    %v1120 = vrot.slane %v1014, 7
    %v1122 = vmul.f32 %v1117, %v1120
    %v1123 = vmul.f32 %v1117, %v1118
    %1125 = vrot.lane.b32.xlu0 %v1123, 64
    %v1126 = vpop.permute.xlu0 %1125
    %v1128 = vadd.f32 %v1122, %v1126
    %v1129 = vtanh.pop %v1128
    %v1130 = vmul.f32 %v1118, %v1129
    %1132 = vrot.lane.b32.xlu0 %v1130, 64
    %v1133 = vpop.permute.xlu0 %1132
    %vm1135 = vcmask 523271
    %1136 = vst.msk [vmem:[#allocation2] sm:$0x80] %vm1135, %v1133
    %v1137 = vrot.slane %v1130, 7
    %1138 = vrot.lane.b32.xlu0 %v1137, 64
    %v1139 = vpop.permute.xlu0 %1138
    %v1140 = vsel %vm238, %v1139, 0
    %1142 = vmatprep.subr.mxu0 %v214
    %1143 = vmatpush1.msra.mxu0 %v213
    %1144 = vmatprep.subr.mxu0 %v216
    %1145 = vmatpush1.msra.mxu0 %v215
    %1146 = vmatprep.subr.mxu0 %v218
    %1147 = vmatpush1.msra.mxu0 %v217
    %1148 = vmatprep.subr.mxu0 %v220
    %1149 = vmatpush1.msra.mxu0 %v219
    %1150 = vmatprep.subr.mxu0 %v222
    %1151 = vmatpush1.msra.mxu0 %v221
    %1152 = vmatprep.subr.mxu0 %v224
    %1153 = vmatpush1.msra.mxu0 %v223
    %1154 = vmatprep.subr.mxu0 %v226
    %1155 = vmatpush1.msra.mxu0 %v225
    %1156 = vmatprep.subr.mxu0 %v228
    %1157 = vmatpush1.msra.mxu0 %v227
    %1158 = vmatprep.subr.mxu0 0.0
    %1159 = vmatpush1.msra.mxu0 0.0
    %1160 = vmatprep.subr.mxu0 0.0
    %1161 = vmatpush1.msra.mxu0 0.0
    %1162 = vmatprep.subr.mxu0 0.0
    %1163 = vmatpush1.msra.mxu0 0.0
    %1164 = vmatprep.subr.mxu0 0.0
    %1165 = vmatpush1.msra.mxu0 0.0
    %1166 = vmatprep.subr.mxu0 0.0
    %1167 = vmatpush1.msra.mxu0 0.0
    %1168 = vmatprep.subr.mxu0 0.0
    %1169 = vmatpush1.msra.mxu0 0.0
    %1170 = vmatprep.subr.mxu0 0.0
    %1171 = vmatpush1.msra.mxu0 0.0
    %1172 = vmatprep.subr.mxu0 0.0
    %1173 = vmatpush1.msra.mxu0 0.0
    %1174 = vmatprep.subr.mxu0 0.0
    %1175 = vmatpush1.msra.mxu0 0.0
    %1176 = vmatprep.subr.mxu0 0.0
    %1177 = vmatpush1.msra.mxu0 0.0
    %1178 = vmatprep.subr.mxu0 0.0
    %1179 = vmatpush1.msra.mxu0 0.0
    %1180 = vmatprep.subr.mxu0 0.0
    %1181 = vmatpush1.msra.mxu0 0.0
    %1182 = vmatprep.subr.mxu0 0.0
    %1183 = vmatpush1.msra.mxu0 0.0
    %1184 = vmatprep.subr.mxu0 0.0
    %1185 = vmatpush1.msra.mxu0 0.0
    %1186 = vmatprep.subr.mxu0 0.0
    %1187 = vmatpush1.msra.mxu0 0.0
    %1188 = vmatprep.subr.mxu0 0.0
    %1189 = vmatpush1.msra.mxu0 0.0
    %1190 = vmatprep.subr.mxu0 0.0
    %1191 = vmatpush1.msra.mxu0 0.0
    %1192 = vmatprep.subr.mxu0 0.0
    %1193 = vmatpush1.msra.mxu0 0.0
    %1194 = vmatprep.subr.mxu0 0.0
    %1195 = vmatpush1.msra.mxu0 0.0
    %1196 = vmatprep.subr.mxu0 0.0
    %1197 = vmatpush1.msra.mxu0 0.0
    %1198 = vmatprep.subr.mxu0 0.0
    %1199 = vmatpush1.msra.mxu0 0.0
    %1200 = vmatprep.subr.mxu0 0.0
    %1201 = vmatpush1.msra.mxu0 0.0
    %1202 = vmatprep.subr.mxu0 0.0
    %1203 = vmatpush1.msra.mxu0 0.0
    %1204 = vmatprep.subr.mxu0 0.0
    %1205 = vmatpush1.msra.mxu0 0.0
    %1206 = vmatprep.mubr.f32.mxu0 0.0
    %1207 = vmatmul.mubr.f32.gmra.mrb[0].mxu0 %v1140
    %v1208 = vpop.f32.mrb[0].mxu0
    %v1209 = vadd.f32 0.0, %v1208
    %v1210 = vpop.f32.mrb[0].mxu0
    %v1211 = vadd.f32 0.0, %v1210
    %1212 = vdwg.mxu0
    %v1213 = vadd.f32 %v209, %v1209
    %v1214 = vadd.f32 %v211, %v1211
    %v1215 = vmul.f32 %v1213, 0.5
    %v1216 = vmul.f32 %v1214, 0.5
    %v1217 = vsel %vm236, %v1213, %v1215
    %v1218 = vsel %vm237, %v1214, %v1216
    %v1219 = vtanh.pop %v1217
    %v1220 = vtanh.pop %v1218
    %v1221 = vmul.f32 %v1219, 0.5
    %v1222 = vmul.f32 %v1220, 0.5
    %v1223 = vadd.f32 %v1221, 0.5
    %v1224 = vadd.f32 %v1222, 0.5
    %v1225 = vsel %vm236, %v1219, %v1223
    %v1226 = vsel %vm237, %v1220, %v1224
    %v1228 = vrot.slane %v1128, 7
    %v1230 = vmul.f32 %v1225, %v1228
    %v1231 = vmul.f32 %v1225, %v1226
    %1233 = vrot.lane.b32.xlu0 %v1231, 64
    %v1234 = vpop.permute.xlu0 %1233
    %v1236 = vadd.f32 %v1230, %v1234
    %v1237 = vtanh.pop %v1236
    %v1238 = vmul.f32 %v1226, %v1237
    %1240 = vrot.lane.b32.xlu0 %v1238, 64
    %v1241 = vpop.permute.xlu0 %1240
    %1243 = vst.msk [vmem:[#allocation2 + $0x8] sm:$0x1] %vm340, %v1241
    %v1244 = vsel %vm238, %v1241, 0
    %1246 = vmatprep.subr.mxu0 %v214
    %1247 = vmatpush1.msra.mxu0 %v213
    %1248 = vmatprep.subr.mxu0 %v216
    %1249 = vmatpush1.msra.mxu0 %v215
    %1250 = vmatprep.subr.mxu0 %v218
    %1251 = vmatpush1.msra.mxu0 %v217
    %1252 = vmatprep.subr.mxu0 %v220
    %1253 = vmatpush1.msra.mxu0 %v219
    %1254 = vmatprep.subr.mxu0 %v222
    %1255 = vmatpush1.msra.mxu0 %v221
    %1256 = vmatprep.subr.mxu0 %v224
    %1257 = vmatpush1.msra.mxu0 %v223
    %1258 = vmatprep.subr.mxu0 %v226
    %1259 = vmatpush1.msra.mxu0 %v225
    %1260 = vmatprep.subr.mxu0 %v228
    %1261 = vmatpush1.msra.mxu0 %v227
    %1262 = vmatprep.subr.mxu0 0.0
    %1263 = vmatpush1.msra.mxu0 0.0
    %1264 = vmatprep.subr.mxu0 0.0
    %1265 = vmatpush1.msra.mxu0 0.0
    %1266 = vmatprep.subr.mxu0 0.0
    %1267 = vmatpush1.msra.mxu0 0.0
    %1268 = vmatprep.subr.mxu0 0.0
    %1269 = vmatpush1.msra.mxu0 0.0
    %1270 = vmatprep.subr.mxu0 0.0
    %1271 = vmatpush1.msra.mxu0 0.0
    %1272 = vmatprep.subr.mxu0 0.0
    %1273 = vmatpush1.msra.mxu0 0.0
    %1274 = vmatprep.subr.mxu0 0.0
    %1275 = vmatpush1.msra.mxu0 0.0
    %1276 = vmatprep.subr.mxu0 0.0
    %1277 = vmatpush1.msra.mxu0 0.0
    %1278 = vmatprep.subr.mxu0 0.0
    %1279 = vmatpush1.msra.mxu0 0.0
    %1280 = vmatprep.subr.mxu0 0.0
    %1281 = vmatpush1.msra.mxu0 0.0
    %1282 = vmatprep.subr.mxu0 0.0
    %1283 = vmatpush1.msra.mxu0 0.0
    %1284 = vmatprep.subr.mxu0 0.0
    %1285 = vmatpush1.msra.mxu0 0.0
    %1286 = vmatprep.subr.mxu0 0.0
    %1287 = vmatpush1.msra.mxu0 0.0
    %1288 = vmatprep.subr.mxu0 0.0
    %1289 = vmatpush1.msra.mxu0 0.0
    %1290 = vmatprep.subr.mxu0 0.0
    %1291 = vmatpush1.msra.mxu0 0.0
    %1292 = vmatprep.subr.mxu0 0.0
    %1293 = vmatpush1.msra.mxu0 0.0
    %1294 = vmatprep.subr.mxu0 0.0
    %1295 = vmatpush1.msra.mxu0 0.0
    %1296 = vmatprep.subr.mxu0 0.0
    %1297 = vmatpush1.msra.mxu0 0.0
    %1298 = vmatprep.subr.mxu0 0.0
    %1299 = vmatpush1.msra.mxu0 0.0
    %1300 = vmatprep.subr.mxu0 0.0
    %1301 = vmatpush1.msra.mxu0 0.0
    %1302 = vmatprep.subr.mxu0 0.0
    %1303 = vmatpush1.msra.mxu0 0.0
    %1304 = vmatprep.subr.mxu0 0.0
    %1305 = vmatpush1.msra.mxu0 0.0
    %1306 = vmatprep.subr.mxu0 0.0
    %1307 = vmatpush1.msra.mxu0 0.0
    %1308 = vmatprep.subr.mxu0 0.0
    %1309 = vmatpush1.msra.mxu0 0.0
    %1310 = vmatprep.mubr.f32.mxu0 0.0
    %1311 = vmatmul.mubr.f32.gmra.mrb[0].mxu0 %v1244
    %v1312 = vpop.f32.mrb[0].mxu0
    %v1313 = vadd.f32 0.0, %v1312
    %v1314 = vpop.f32.mrb[0].mxu0
    %v1315 = vadd.f32 0.0, %v1314
    %1316 = vdwg.mxu0
    %v1319 = vrot.slane %v1313, 7
    %v1320 = vrot.slane %v1315, 7
    %v1323 = vadd.f32 %v209, %v1319
    %v1324 = vadd.f32 %v211, %v1320
    %v1325 = vmul.f32 %v1323, 0.5
    %v1326 = vmul.f32 %v1324, 0.5
    %v1327 = vsel %vm236, %v1323, %v1325
    %v1328 = vsel %vm237, %v1324, %v1326
    %v1329 = vtanh.pop %v1327
    %v1330 = vtanh.pop %v1328
    %v1331 = vmul.f32 %v1329, 0.5
    %v1332 = vmul.f32 %v1330, 0.5
    %v1333 = vadd.f32 %v1331, 0.5
    %v1334 = vadd.f32 %v1332, 0.5
    %v1335 = vsel %vm236, %v1329, %v1333
    %v1336 = vsel %vm237, %v1330, %v1334
    %v1338 = vrot.slane %v1236, 7
    %v1340 = vmul.f32 %v1335, %v1338
    %v1341 = vmul.f32 %v1335, %v1336
    %1343 = vrot.lane.b32.xlu0 %v1341, 64
    %v1344 = vpop.permute.xlu0 %1343
    %v1346 = vadd.f32 %v1340, %v1344
    %v1347 = vtanh.pop %v1346
    %v1348 = vmul.f32 %v1336, %v1347
    %1350 = vrot.lane.b32.xlu0 %v1348, 64
    %v1351 = vpop.permute.xlu0 %1350
    %1353 = vst.msk [vmem:[#allocation2 + $0x8] sm:$0x2] %vm451, %v1351
    %v1354 = vld [vmem:[#allocation2] sm:$0xff]
    %v1355 = vld [vmem:[#allocation2 + $0x8] sm:$0x3]
    %v1356 = vlaneseq
    %v1357 = vshrl.u32 %v1356, 7
    %v1358 = vadd.s32 %v1357, 8
    %v1359 = vsub.s32 9, %v1357
    %v1360 = vsub.s32 9, %v1358
    %vm1361 = vcmp.eq.s32.totalorder %v230, %v1359
    %vm1362 = vcmp.eq.s32.totalorder %v230, %v1360
    %v1363 = vsel %vm1361, 1, 0
    %v1364 = vsel %vm1362, 1, 0
    %v1365 = vcvt.s32.f32 %v1363
    %v1366 = vcvt.s32.f32 %v1364
    %1369 = vrot.lane.b32.xlu0 %v1354, 96
    %v1370 = vpop.permute.xlu0 %1369
    %1371 = vrot.lane.b32.xlu0 %v1355, 96
    %v1372 = vpop.permute.xlu0 %1371
    %vm1374 = vcmask 80896
    %v1376 = vsel %vm1374, %v1365, 0
    %v1379 = vsel %vm1374, %v1366, 0
    %vm1381 = vcmask 1041408
    %v1382 = vsel %vm1381, %v1372, 0
    %1384 = vmatprep.subr.mxu0 0.0
    %1385 = vmatpush1.msra.mxu0 %v1370
    %1386 = vmatprep.subr.mxu0 0.0
    %1387 = vmatpush1.msra.mxu0 %v1382
    %1388 = vmatprep.subr.mxu0 0.0
    %1389 = vmatpush1.msra.mxu0 0.0
    %1390 = vmatprep.subr.mxu0 0.0
    %1391 = vmatpush1.msra.mxu0 0.0
    %1392 = vmatprep.subr.mxu0 0.0
    %1393 = vmatpush1.msra.mxu0 0.0
    %1394 = vmatprep.subr.mxu0 0.0
    %1395 = vmatpush1.msra.mxu0 0.0
    %1396 = vmatprep.subr.mxu0 0.0
    %1397 = vmatpush1.msra.mxu0 0.0
    %1398 = vmatprep.subr.mxu0 0.0
    %1399 = vmatpush1.msra.mxu0 0.0
    %1400 = vmatprep.subr.mxu0 0.0
    %1401 = vmatpush1.msra.mxu0 0.0
    %1402 = vmatprep.subr.mxu0 0.0
    %1403 = vmatpush1.msra.mxu0 0.0
    %1404 = vmatprep.subr.mxu0 0.0
    %1405 = vmatpush1.msra.mxu0 0.0
    %1406 = vmatprep.subr.mxu0 0.0
    %1407 = vmatpush1.msra.mxu0 0.0
    %1408 = vmatprep.subr.mxu0 0.0
    %1409 = vmatpush1.msra.mxu0 0.0
    %1410 = vmatprep.subr.mxu0 0.0
    %1411 = vmatpush1.msra.mxu0 0.0
    %1412 = vmatprep.subr.mxu0 0.0
    %1413 = vmatpush1.msra.mxu0 0.0
    %1414 = vmatprep.subr.mxu0 0.0
    %1415 = vmatpush1.msra.mxu0 0.0
    %1416 = vmatprep.subr.mxu0 0.0
    %1417 = vmatpush1.msra.mxu0 0.0
    %1418 = vmatprep.subr.mxu0 0.0
    %1419 = vmatpush1.msra.mxu0 0.0
    %1420 = vmatprep.subr.mxu0 0.0
    %1421 = vmatpush1.msra.mxu0 0.0
    %1422 = vmatprep.subr.mxu0 0.0
    %1423 = vmatpush1.msra.mxu0 0.0
    %1424 = vmatprep.subr.mxu0 0.0
    %1425 = vmatpush1.msra.mxu0 0.0
    %1426 = vmatprep.subr.mxu0 0.0
    %1427 = vmatpush1.msra.mxu0 0.0
    %1428 = vmatprep.subr.mxu0 0.0
    %1429 = vmatpush1.msra.mxu0 0.0
    %1430 = vmatprep.subr.mxu0 0.0
    %1431 = vmatpush1.msra.mxu0 0.0
    %1432 = vmatprep.subr.mxu0 0.0
    %1433 = vmatpush1.msra.mxu0 0.0
    %1434 = vmatprep.subr.mxu0 0.0
    %1435 = vmatpush1.msra.mxu0 0.0
    %1436 = vmatprep.subr.mxu0 0.0
    %1437 = vmatpush1.msra.mxu0 0.0
    %1438 = vmatprep.subr.mxu0 0.0
    %1439 = vmatpush1.msra.mxu0 0.0
    %1440 = vmatprep.subr.mxu0 0.0
    %1441 = vmatpush1.msra.mxu0 0.0
    %1442 = vmatprep.subr.mxu0 0.0
    %1443 = vmatpush1.msra.mxu0 0.0
    %1444 = vmatprep.subr.mxu0 0.0
    %1445 = vmatpush1.msra.mxu0 0.0
    %1446 = vmatprep.subr.mxu0 0.0
    %1447 = vmatpush1.msra.mxu0 0.0
    %1448 = vmatprep.mubr.f32.mxu0 0.0
    %1449 = vmatmul.mubr.f32.gmra.mrb[0].mxu0 %v1376
    %v1450 = vpop.f32.mrb[0].mxu0
    %v1451 = vadd.f32 0.0, %v1450
    %v1452 = vpop.f32.mrb[0].mxu0
    %1453 = vmatprep.mubr.f32.mxu0 0.0
    %1454 = vmatmul.mubr.f32.gmra.mrb[0].mxu0 %v1379
    %v1455 = vpop.f32.mrb[0].mxu0
    %v1456 = vadd.f32 0.0, %v1455
    %v1457 = vpop.f32.mrb[0].mxu0
    %1458 = vdwg.mxu0
    %1461 = vrot.lane.b32.xlu0 %v1451, 32
    %v1462 = vpop.permute.xlu0 %1461
    %1463 = vrot.lane.b32.xlu0 %v1456, 32
    %v1464 = vpop.permute.xlu0 %1463
    %vm1467 = vcmask 261120
    %v1468 = vsel %vm1467, %v1354, %v1462
    %v1469 = vsel %vm1467, %v1355, %v1464
    %1470 = vst.msk [vmem:[#allocation2] sm:$0xff] %vm238, %v1468
    %vm1471 = vcmask 517120
    %1472 = vst.msk [vmem:[#allocation2 + $0x8] sm:$0x3] %vm1471, %v1469
    %v1473 = vld [vmem:[%s5] sm:$0xff]
    %v1474 = vld [vmem:[%s5 + $0x8] sm:$0xff]
    %v1475 = vld [vmem:[%s5 + $0x10] sm:$0xff]
    %v1476 = vld [vmem:[%s5 + $0x18] sm:$0xff]
    %v1477 = vld [vmem:[%s5 + $0x20] sm:$0xff]
    %v1478 = vld [vmem:[%s5 + $0x28] sm:$0xff]
    %v1479 = vld [vmem:[%s5 + $0x30] sm:$0xff]
    %v1480 = vld [vmem:[%s5 + $0x38] sm:$0xff]
    %v1481 = vld [vmem:[#allocation11] sm:$0x1]
    %v1483 = vlaneseq
    %v1484 = vshrl.u32 %v1483, 7
    %v1485 = vsub.s32 0, %v1484
    %v1486 = vrot.slane %v1481, %v1485
    %v1489 = vsel %vm238, %v1468, 0
    %v1492 = vsel %vm238, %v1469, 0
    %1494 = vmatprep.subr.mxu0 0.0
    %1495 = vmatpush1.msra.mxu0 %v1473
    %1496 = vmatprep.subr.mxu0 0.0
    %1497 = vmatpush1.msra.mxu0 %v1474
    %1498 = vmatprep.subr.mxu0 0.0
    %1499 = vmatpush1.msra.mxu0 %v1475
    %1500 = vmatprep.subr.mxu0 0.0
    %1501 = vmatpush1.msra.mxu0 %v1476
    %1502 = vmatprep.subr.mxu0 0.0
    %1503 = vmatpush1.msra.mxu0 %v1477
    %1504 = vmatprep.subr.mxu0 0.0
    %1505 = vmatpush1.msra.mxu0 %v1478
    %1506 = vmatprep.subr.mxu0 0.0
    %1507 = vmatpush1.msra.mxu0 %v1479
    %1508 = vmatprep.subr.mxu0 0.0
    %1509 = vmatpush1.msra.mxu0 %v1480
    %1510 = vmatprep.subr.mxu0 0.0
    %1511 = vmatpush1.msra.mxu0 0.0
    %1512 = vmatprep.subr.mxu0 0.0
    %1513 = vmatpush1.msra.mxu0 0.0
    %1514 = vmatprep.subr.mxu0 0.0
    %1515 = vmatpush1.msra.mxu0 0.0
    %1516 = vmatprep.subr.mxu0 0.0
    %1517 = vmatpush1.msra.mxu0 0.0
    %1518 = vmatprep.subr.mxu0 0.0
    %1519 = vmatpush1.msra.mxu0 0.0
    %1520 = vmatprep.subr.mxu0 0.0
    %1521 = vmatpush1.msra.mxu0 0.0
    %1522 = vmatprep.subr.mxu0 0.0
    %1523 = vmatpush1.msra.mxu0 0.0
    %1524 = vmatprep.subr.mxu0 0.0
    %1525 = vmatpush1.msra.mxu0 0.0
    %1526 = vmatprep.subr.mxu0 0.0
    %1527 = vmatpush1.msra.mxu0 0.0
    %1528 = vmatprep.subr.mxu0 0.0
    %1529 = vmatpush1.msra.mxu0 0.0
    %1530 = vmatprep.subr.mxu0 0.0
    %1531 = vmatpush1.msra.mxu0 0.0
    %1532 = vmatprep.subr.mxu0 0.0
    %1533 = vmatpush1.msra.mxu0 0.0
    %1534 = vmatprep.subr.mxu0 0.0
    %1535 = vmatpush1.msra.mxu0 0.0
    %1536 = vmatprep.subr.mxu0 0.0
    %1537 = vmatpush1.msra.mxu0 0.0
    %1538 = vmatprep.subr.mxu0 0.0
    %1539 = vmatpush1.msra.mxu0 0.0
    %1540 = vmatprep.subr.mxu0 0.0
    %1541 = vmatpush1.msra.mxu0 0.0
    %1542 = vmatprep.subr.mxu0 0.0
    %1543 = vmatpush1.msra.mxu0 0.0
    %1544 = vmatprep.subr.mxu0 0.0
    %1545 = vmatpush1.msra.mxu0 0.0
    %1546 = vmatprep.subr.mxu0 0.0
    %1547 = vmatpush1.msra.mxu0 0.0
    %1548 = vmatprep.subr.mxu0 0.0
    %1549 = vmatpush1.msra.mxu0 0.0
    %1550 = vmatprep.subr.mxu0 0.0
    %1551 = vmatpush1.msra.mxu0 0.0
    %1552 = vmatprep.subr.mxu0 0.0
    %1553 = vmatpush1.msra.mxu0 0.0
    %1554 = vmatprep.subr.mxu0 0.0
    %1555 = vmatpush1.msra.mxu0 0.0
    %1556 = vmatprep.subr.mxu0 0.0
    %1557 = vmatpush1.msra.mxu0 0.0
    %1558 = vmatprep.mubr.f32.mxu0 0.0
    %1559 = vmatmul.mubr.f32.gmra.mrb[0].mxu0 %v1489
    %v1560 = vpop.f32.mrb[0].mxu0
    %v1561 = vadd.f32 %v1486, %v1560
    %v1562 = vpop.f32.mrb[0].mxu0
    %1563 = vmatprep.mubr.f32.mxu0 0.0
    %1564 = vmatmul.mubr.f32.gmra.mrb[0].mxu0 %v1492
    %v1565 = vpop.f32.mrb[0].mxu0
    %v1566 = vadd.f32 %v1486, %v1565
    %v1567 = vpop.f32.mrb[0].mxu0
    %1568 = vdwg.mxu0
    %v1569 = vmax.f32 %v1561, 0.0
    %v1570 = vmax.f32 %v1566, 0.0
    %v1571 = vld [vmem:[%s7] sm:$0xff]
    %v1572 = vld [vmem:[%s7 + $0x8] sm:$0xff]
    %v1573 = vld [vmem:[%s8] sm:$0x1]
    %v1575 = vlaneseq
    %v1576 = vshrl.u32 %v1575, 7
    %v1577 = vsub.s32 0, %v1576
    %v1578 = vrot.slane %v1573, %v1577
    %vm1580 = vcmask 130048
    %v1582 = vsel %vm1580, %v1569, 0
    %v1585 = vsel %vm1580, %v1570, 0
    %1587 = vmatprep.subr.mxu0 0.0
    %1588 = vmatpush1.msra.mxu0 %v1571
    %1589 = vmatprep.subr.mxu0 0.0
    %1590 = vmatpush1.msra.mxu0 %v1572
    %1591 = vmatprep.subr.mxu0 0.0
    %1592 = vmatpush1.msra.mxu0 0.0
    %1593 = vmatprep.subr.mxu0 0.0
    %1594 = vmatpush1.msra.mxu0 0.0
    %1595 = vmatprep.subr.mxu0 0.0
    %1596 = vmatpush1.msra.mxu0 0.0
    %1597 = vmatprep.subr.mxu0 0.0
    %1598 = vmatpush1.msra.mxu0 0.0
    %1599 = vmatprep.subr.mxu0 0.0
    %1600 = vmatpush1.msra.mxu0 0.0
    %1601 = vmatprep.subr.mxu0 0.0
    %1602 = vmatpush1.msra.mxu0 0.0
    %1603 = vmatprep.subr.mxu0 0.0
    %1604 = vmatpush1.msra.mxu0 0.0
    %1605 = vmatprep.subr.mxu0 0.0
    %1606 = vmatpush1.msra.mxu0 0.0
    %1607 = vmatprep.subr.mxu0 0.0
    %1608 = vmatpush1.msra.mxu0 0.0
    %1609 = vmatprep.subr.mxu0 0.0
    %1610 = vmatpush1.msra.mxu0 0.0
    %1611 = vmatprep.subr.mxu0 0.0
    %1612 = vmatpush1.msra.mxu0 0.0
    %1613 = vmatprep.subr.mxu0 0.0
    %1614 = vmatpush1.msra.mxu0 0.0
    %1615 = vmatprep.subr.mxu0 0.0
    %1616 = vmatpush1.msra.mxu0 0.0
    %1617 = vmatprep.subr.mxu0 0.0
    %1618 = vmatpush1.msra.mxu0 0.0
    %1619 = vmatprep.subr.mxu0 0.0
    %1620 = vmatpush1.msra.mxu0 0.0
    %1621 = vmatprep.subr.mxu0 0.0
    %1622 = vmatpush1.msra.mxu0 0.0
    %1623 = vmatprep.subr.mxu0 0.0
    %1624 = vmatpush1.msra.mxu0 0.0
    %1625 = vmatprep.subr.mxu0 0.0
    %1626 = vmatpush1.msra.mxu0 0.0
    %1627 = vmatprep.subr.mxu0 0.0
    %1628 = vmatpush1.msra.mxu0 0.0
    %1629 = vmatprep.subr.mxu0 0.0
    %1630 = vmatpush1.msra.mxu0 0.0
    %1631 = vmatprep.subr.mxu0 0.0
    %1632 = vmatpush1.msra.mxu0 0.0
    %1633 = vmatprep.subr.mxu0 0.0
    %1634 = vmatpush1.msra.mxu0 0.0
    %1635 = vmatprep.subr.mxu0 0.0
    %1636 = vmatpush1.msra.mxu0 0.0
    %1637 = vmatprep.subr.mxu0 0.0
    %1638 = vmatpush1.msra.mxu0 0.0
    %1639 = vmatprep.subr.mxu0 0.0
    %1640 = vmatpush1.msra.mxu0 0.0
    %1641 = vmatprep.subr.mxu0 0.0
    %1642 = vmatpush1.msra.mxu0 0.0
    %1643 = vmatprep.subr.mxu0 0.0
    %1644 = vmatpush1.msra.mxu0 0.0
    %1645 = vmatprep.subr.mxu0 0.0
    %1646 = vmatpush1.msra.mxu0 0.0
    %1647 = vmatprep.subr.mxu0 0.0
    %1648 = vmatpush1.msra.mxu0 0.0
    %1649 = vmatprep.subr.mxu0 0.0
    %1650 = vmatpush1.msra.mxu0 0.0
    %1651 = vmatprep.mubr.f32.mxu0 0.0
    %1652 = vmatmul.mubr.f32.gmra.mrb[0].mxu0 %v1582
    %v1653 = vpop.f32.mrb[0].mxu0
    %v1654 = vadd.f32 %v1578, %v1653
    %v1655 = vpop.f32.mrb[0].mxu0
    %1656 = vmatprep.mubr.f32.mxu0 0.0
    %1657 = vmatmul.mubr.f32.gmra.mrb[0].mxu0 %v1585
    %v1658 = vpop.f32.mrb[0].mxu0
    %v1659 = vadd.f32 %v1578, %v1658
    %v1660 = vpop.f32.mrb[0].mxu0
    %1661 = vdwg.mxu0
    %1662 = vmax.xlane.f32.xlu0 %v1654
    %v1663 = vpop.xlane.xlu0 %1662
    %v1664 = vsel %vm1381, %v1659, -inf
    %1665 = vmax.xlane.f32.xlu0 %v1664
    %v1666 = vpop.xlane.xlu0 %1665
    %v1667 = vsub.f32 %v1654, %v1663
    %v1668 = vsub.f32 %v1659, %v1666
    %v1669 = vmul.f32 %v1667, 1.442695
    %v1670 = vpow.pop %v1669
    %v1671 = vmul.f32 %v1668, 1.442695
    %v1672 = vpow.pop %v1671
    %1673 = vadd.xlane.f32.xlu0 %v1670
    %v1674 = vpop.xlane.xlu0 %1673
    %v1675 = vsel %vm1381, %v1672, 0.0
    %1676 = vadd.xlane.f32.xlu0 %v1675
    %v1677 = vpop.xlane.xlu0 %1676
    %v1678 = vlog2.pop %v1674
    %v1679 = vmul.f32 %v1678, 0.6931472
    %v1680 = vlog2.pop %v1677
    %v1681 = vmul.f32 %v1680, 0.6931472
    %v1682 = vsub.f32 %v1667, %v1679
    %v1683 = vsub.f32 %v1668, %v1681
    %1684 = vst [vmem:[#allocation14] sm:$0xff] %v1682
    %1685 = vst [vmem:[#allocation14 + $0x8] sm:$0x3] %v1683
    %s1686 = sld [smem:[#allocation5]]
    %s1687 = sld [smem:[#allocation5 + $0x1]]
    %s1688 = scalar_lea.vmem [#allocation2], %s1686
    %v1689 = vld [vmem:[%s1688] sm:$0x1]
    %1690 = vst.msk [vmem:[#allocation3] sm:$0x1] %vm340, %v1689
    %s1691 = scalar_lea.vmem [#allocation2], %s1687
    %v1692 = vld [vmem:[%s1691] sm:$0x1]
    %1694 = vrot.lane.b32.xlu0 %v1692, 64
    %v1695 = vpop.permute.xlu0 %1694
    %vm1697 = vcmask 1040896
    %1698 = vst.msk [vmem:[#allocation3] sm:$0x1] %vm1697, %v1695
    %s1699 = sld [smem:[#allocation5 + $0x80]]
    %s1700 = sld [smem:[#allocation5 + $0x81]]
    %s1701 = scalar_lea.vmem [#allocation2], %s1699
    %v1702 = vld [vmem:[%s1701] sm:$0x1]
    %1703 = vst.msk [vmem:[#allocation3 + $0x1] sm:$0x1] %vm340, %v1702
    %s1704 = scalar_lea.vmem [#allocation2], %s1700
    %v1705 = vld [vmem:[%s1704] sm:$0x1]
    %1707 = vrot.lane.b32.xlu0 %v1705, 64
    %v1708 = vpop.permute.xlu0 %1707
    %1710 = vst.msk [vmem:[#allocation3 + $0x1] sm:$0x1] %vm1697, %v1708
    %s1711 = sld [smem:[#allocation5 + $0x100]]
    %s1712 = sld [smem:[#allocation5 + $0x101]]
    %s1713 = scalar_lea.vmem [#allocation2], %s1711
    %v1714 = vld [vmem:[%s1713] sm:$0x1]
    %1715 = vst.msk [vmem:[#allocation3 + $0x2] sm:$0x1] %vm340, %v1714
    %s1716 = scalar_lea.vmem [#allocation2], %s1712
    %v1717 = vld [vmem:[%s1716] sm:$0x1]
    %1719 = vrot.lane.b32.xlu0 %v1717, 64
    %v1720 = vpop.permute.xlu0 %1719
    %1722 = vst.msk [vmem:[#allocation3 + $0x2] sm:$0x1] %vm1697, %v1720
    %v1723 = vld [vmem:[#allocation3] sm:$0x7]
    %v1724 = vld [vmem:[%s9] sm:$0xff]
    %v1725 = vld [vmem:[%s9 + $0x8] sm:$0xff]
    %v1726 = vld [vmem:[%s9 + $0x10] sm:$0xff]
    %v1727 = vld [vmem:[%s9 + $0x18] sm:$0xff]
    %v1728 = vld [vmem:[%s9 + $0x20] sm:$0xff]
    %v1729 = vld [vmem:[%s9 + $0x28] sm:$0xff]
    %v1730 = vld [vmem:[%s9 + $0x30] sm:$0xff]
    %v1731 = vld [vmem:[%s9 + $0x38] sm:$0xff]
    %v1732 = vld [vmem:[%s9 + $0x40] sm:$0xff]
    %v1733 = vld [vmem:[%s9 + $0x48] sm:$0xff]
    %v1734 = vld [vmem:[%s9 + $0x50] sm:$0xff]
    %v1735 = vld [vmem:[%s9 + $0x58] sm:$0xff]
    %v1736 = vld [vmem:[%s9 + $0x60] sm:$0xff]
    %v1737 = vld [vmem:[%s9 + $0x68] sm:$0xff]
    %v1738 = vld [vmem:[%s9 + $0x70] sm:$0xff]
    %v1739 = vld [vmem:[%s9 + $0x78] sm:$0xff]
    %v1740 = vld [vmem:[%s10] sm:$0x1]
    %v1742 = vlaneseq
    %v1743 = vshrl.u32 %v1742, 7
    %v1744 = vsub.s32 0, %v1743
    %v1745 = vrot.slane %v1740, %v1744
    %1747 = vmatprep.subr.mxu0 0.0
    %1748 = vmatpush1.msra.mxu0 %v1724
    %1749 = vmatprep.subr.mxu0 0.0
    %1750 = vmatpush1.msra.mxu0 %v1725
    %1751 = vmatprep.subr.mxu0 0.0
    %1752 = vmatpush1.msra.mxu0 %v1726
    %1753 = vmatprep.subr.mxu0 0.0
    %1754 = vmatpush1.msra.mxu0 %v1727
    %1755 = vmatprep.subr.mxu0 0.0
    %1756 = vmatpush1.msra.mxu0 %v1728
    %1757 = vmatprep.subr.mxu0 0.0
    %1758 = vmatpush1.msra.mxu0 %v1729
    %1759 = vmatprep.subr.mxu0 0.0
    %1760 = vmatpush1.msra.mxu0 %v1730
    %1761 = vmatprep.subr.mxu0 0.0
    %1762 = vmatpush1.msra.mxu0 %v1731
    %1763 = vmatprep.subr.mxu0 0.0
    %1764 = vmatpush1.msra.mxu0 %v1732
    %1765 = vmatprep.subr.mxu0 0.0
    %1766 = vmatpush1.msra.mxu0 %v1733
    %1767 = vmatprep.subr.mxu0 0.0
    %1768 = vmatpush1.msra.mxu0 %v1734
    %1769 = vmatprep.subr.mxu0 0.0
    %1770 = vmatpush1.msra.mxu0 %v1735
    %1771 = vmatprep.subr.mxu0 0.0
    %1772 = vmatpush1.msra.mxu0 %v1736
    %1773 = vmatprep.subr.mxu0 0.0
    %1774 = vmatpush1.msra.mxu0 %v1737
    %1775 = vmatprep.subr.mxu0 0.0
    %1776 = vmatpush1.msra.mxu0 %v1738
    %1777 = vmatprep.subr.mxu0 0.0
    %1778 = vmatpush1.msra.mxu0 %v1739
    %1779 = vmatprep.subr.mxu0 0.0
    %1780 = vmatpush1.msra.mxu0 0.0
    %1781 = vmatprep.subr.mxu0 0.0
    %1782 = vmatpush1.msra.mxu0 0.0
    %1783 = vmatprep.subr.mxu0 0.0
    %1784 = vmatpush1.msra.mxu0 0.0
    %1785 = vmatprep.subr.mxu0 0.0
    %1786 = vmatpush1.msra.mxu0 0.0
    %1787 = vmatprep.subr.mxu0 0.0
    %1788 = vmatpush1.msra.mxu0 0.0
    %1789 = vmatprep.subr.mxu0 0.0
    %1790 = vmatpush1.msra.mxu0 0.0
    %1791 = vmatprep.subr.mxu0 0.0
    %1792 = vmatpush1.msra.mxu0 0.0
    %1793 = vmatprep.subr.mxu0 0.0
    %1794 = vmatpush1.msra.mxu0 0.0
    %1795 = vmatprep.subr.mxu0 0.0
    %1796 = vmatpush1.msra.mxu0 0.0
    %1797 = vmatprep.subr.mxu0 0.0
    %1798 = vmatpush1.msra.mxu0 0.0
    %1799 = vmatprep.subr.mxu0 0.0
    %1800 = vmatpush1.msra.mxu0 0.0
    %1801 = vmatprep.subr.mxu0 0.0
    %1802 = vmatpush1.msra.mxu0 0.0
    %1803 = vmatprep.subr.mxu0 0.0
    %1804 = vmatpush1.msra.mxu0 0.0
    %1805 = vmatprep.subr.mxu0 0.0
    %1806 = vmatpush1.msra.mxu0 0.0
    %1807 = vmatprep.subr.mxu0 0.0
    %1808 = vmatpush1.msra.mxu0 0.0
    %1809 = vmatprep.subr.mxu0 0.0
    %1810 = vmatpush1.msra.mxu0 0.0
    %1811 = vmatprep.mubr.f32.mxu0 0.0
    %1812 = vmatmul.mubr.f32.gmra.mrb[0].mxu0 %v1723
    %v1813 = vpop.f32.mrb[0].mxu0
    %v1814 = vadd.f32 %v1745, %v1813
    %v1815 = vpop.f32.mrb[0].mxu0
    %1816 = vdwg.mxu0
    %v1817 = vmax.f32 %v1814, 0.0
    %v1818 = vld [vmem:[#allocation12] sm:$0xff]
    %v1819 = vld [vmem:[#allocation12 + $0x8] sm:$0xff]
    %v1820 = vld [vmem:[#allocation12 + $0x10] sm:$0xff]
    %v1821 = vld [vmem:[#allocation12 + $0x18] sm:$0xff]
    %v1822 = vld [vmem:[%s12] sm:$0x1]
    %v1824 = vlaneseq
    %v1825 = vshrl.u32 %v1824, 7
    %v1826 = vsub.s32 0, %v1825
    %v1827 = vrot.slane %v1822, %v1826
    %v1830 = vsel %vm1467, %v1817, 0
    %1832 = vmatprep.subr.mxu0 0.0
    %1833 = vmatpush1.msra.mxu0 %v1818
    %1834 = vmatprep.subr.mxu0 0.0
    %1835 = vmatpush1.msra.mxu0 %v1819
    %1836 = vmatprep.subr.mxu0 0.0
    %1837 = vmatpush1.msra.mxu0 %v1820
    %1838 = vmatprep.subr.mxu0 0.0
    %1839 = vmatpush1.msra.mxu0 %v1821
    %1840 = vmatprep.subr.mxu0 0.0
    %1841 = vmatpush1.msra.mxu0 0.0
    %1842 = vmatprep.subr.mxu0 0.0
    %1843 = vmatpush1.msra.mxu0 0.0
    %1844 = vmatprep.subr.mxu0 0.0
    %1845 = vmatpush1.msra.mxu0 0.0
    %1846 = vmatprep.subr.mxu0 0.0
    %1847 = vmatpush1.msra.mxu0 0.0
    %1848 = vmatprep.subr.mxu0 0.0
    %1849 = vmatpush1.msra.mxu0 0.0
    %1850 = vmatprep.subr.mxu0 0.0
    %1851 = vmatpush1.msra.mxu0 0.0
    %1852 = vmatprep.subr.mxu0 0.0
    %1853 = vmatpush1.msra.mxu0 0.0
    %1854 = vmatprep.subr.mxu0 0.0
    %1855 = vmatpush1.msra.mxu0 0.0
    %1856 = vmatprep.subr.mxu0 0.0
    %1857 = vmatpush1.msra.mxu0 0.0
    %1858 = vmatprep.subr.mxu0 0.0
    %1859 = vmatpush1.msra.mxu0 0.0
    %1860 = vmatprep.subr.mxu0 0.0
    %1861 = vmatpush1.msra.mxu0 0.0
    %1862 = vmatprep.subr.mxu0 0.0
    %1863 = vmatpush1.msra.mxu0 0.0
    %1864 = vmatprep.subr.mxu0 0.0
    %1865 = vmatpush1.msra.mxu0 0.0
    %1866 = vmatprep.subr.mxu0 0.0
    %1867 = vmatpush1.msra.mxu0 0.0
    %1868 = vmatprep.subr.mxu0 0.0
    %1869 = vmatpush1.msra.mxu0 0.0
    %1870 = vmatprep.subr.mxu0 0.0
    %1871 = vmatpush1.msra.mxu0 0.0
    %1872 = vmatprep.subr.mxu0 0.0
    %1873 = vmatpush1.msra.mxu0 0.0
    %1874 = vmatprep.subr.mxu0 0.0
    %1875 = vmatpush1.msra.mxu0 0.0
    %1876 = vmatprep.subr.mxu0 0.0
    %1877 = vmatpush1.msra.mxu0 0.0
    %1878 = vmatprep.subr.mxu0 0.0
    %1879 = vmatpush1.msra.mxu0 0.0
    %1880 = vmatprep.subr.mxu0 0.0
    %1881 = vmatpush1.msra.mxu0 0.0
    %1882 = vmatprep.subr.mxu0 0.0
    %1883 = vmatpush1.msra.mxu0 0.0
    %1884 = vmatprep.subr.mxu0 0.0
    %1885 = vmatpush1.msra.mxu0 0.0
    %1886 = vmatprep.subr.mxu0 0.0
    %1887 = vmatpush1.msra.mxu0 0.0
    %1888 = vmatprep.subr.mxu0 0.0
    %1889 = vmatpush1.msra.mxu0 0.0
    %1890 = vmatprep.subr.mxu0 0.0
    %1891 = vmatpush1.msra.mxu0 0.0
    %1892 = vmatprep.subr.mxu0 0.0
    %1893 = vmatpush1.msra.mxu0 0.0
    %1894 = vmatprep.subr.mxu0 0.0
    %1895 = vmatpush1.msra.mxu0 0.0
    %1896 = vmatprep.mubr.f32.mxu0 0.0
    %1897 = vmatmul.mubr.f32.gmra.mrb[0].mxu0 %v1830
    %v1898 = vpop.f32.mrb[0].mxu0
    %v1899 = vadd.f32 %v1827, %v1898
    %v1900 = vpop.f32.mrb[0].mxu0
    %1901 = vdwg.mxu0
    %vm1902 = vcmask 1042432
    %v1903 = vsel %vm1902, %v1899, -inf
    %1904 = vmax.xlane.f32.xlu0 %v1903
    %v1905 = vpop.xlane.xlu0 %1904
    %v1906 = vsub.f32 %v1899, %v1905
    %v1907 = vmul.f32 %v1906, 1.442695
    %v1908 = vpow.pop %v1907
    %v1909 = vsel %vm1902, %v1908, 0.0
    %1910 = vadd.xlane.f32.xlu0 %v1909
    %v1911 = vpop.xlane.xlu0 %1910
    %v1912 = vlog2.pop %v1911
    %v1913 = vmul.f32 %v1912, 0.6931472
    %v1914 = vsub.f32 %v1906, %v1913
    %1915 = vst [vmem:[#allocation15] sm:$0x7] %v1914
    // Predicated region
    $region66: #{tpu_custom_call.1} parent=1 // pred_check
      _
    $region67: #{tpu_custom_call.1} parent=1 // pred_check_branch
      %1917 = sbr.rel (0) target = $region69
    $region68: #{tpu_custom_call.1} parent=1 // pred_region
      %s1919 = ssub.s32 256, 256
      %1920 = vsyncadd [#allocation8], %s1919
      %s1921 = sshll.u32 [#allocation14], 4
      %s1922 = int_to_ptr.vmem [resolvable:$true] %s1921
      %1927 = dma.vmem_to_hbm [thread:$0]  %s1922, 256, %s13, [#allocation8], 128, 128, 8
    $region69: #{tpu_custom_call.1} parent=1 // pred_fallthru
      _
    // Predicated region
    $region70: #{tpu_custom_call.1} parent=1 // pred_check
      _
    $region71: #{tpu_custom_call.1} parent=1 // pred_check_branch
      %1929 = sbr.rel (0) target = $region73
    $region72: #{tpu_custom_call.1} parent=1 // pred_region
      %s1931 = ssub.s32 64, 64
      %1932 = vsyncadd [#allocation16], %s1931
      %s1934 = sshll.u32 [#allocation15], 4
      %s1935 = int_to_ptr.vmem [resolvable:$true] %s1934
      %1937 = dma.vmem_to_hbm [thread:$0]  %s1935, 64, %s14, [#allocation16]
    $region73: #{tpu_custom_call.1} parent=1 // pred_fallthru
      _
    // Predicated region
    $region74: #{tpu_custom_call.1} parent=1 // pred_check
      _
    $region75: #{tpu_custom_call.1} parent=1 // pred_check_branch
      %1939 = sbr.rel (0) target = $region77
    $region76: #{tpu_custom_call.1} parent=1 // pred_region
      %1940 = dma.done [#allocation8], 256
    $region77: #{tpu_custom_call.1} parent=1 // pred_fallthru
      _
    // Predicated region
    $region78: #{tpu_custom_call.1} parent=1 // pred_check
      _
    $region79: #{tpu_custom_call.1} parent=1 // pred_check_branch
      %1942 = sbr.rel (0) target = $region81
    $region80: #{tpu_custom_call.1} parent=1 // pred_region
      %1943 = dma.done [#allocation16], 64
    $region81: #{tpu_custom_call.1} parent=1 // pred_fallthru
      _
    %1944 = vsyncpa [#allocation7], 1
    %1945 = vsyncpa [#allocation10], 1
    %1946 = vsyncpa [#allocation13], 1
    %1947 = vsyncpa [#allocation8], 1
    %1948 = vsyncpa [#allocation16], 1

</llo_original>
